<compile_context>
chip_gen: v6e
topology: v6e:2x2x1
jax: 0.10.0
libtpu: 0.0.40
codegen_flags: <defaults>
</compile_context>

<pallas_src>
import functools
import math

import jax
import jax.numpy as jnp
import numpy as np
from jax.experimental import pallas as pl
from jax.experimental.pallas import tpu as pltpu


def trigram_attn_kernel(x_ref, wqkv_ref, bqkv_ref, wp_ref, bp_ref,
                        aseg_ref, aexp_ref, o_ref, *,
                        seq_len, cp, matmul_dtype, approx_recip):
    """One batch tile (bt sequences flattened to M = bt*T rows) per grid step.

    x_ref:    (M, Cp)     input rows (matmul_dtype)
    wqkv_ref: (Cp, 3*Cp)  fused, pre-transposed, zero-padded Q|K|V weights
    bqkv_ref: (1, 3*Cp)   fused biases (f32)
    wp_ref:   (Cp, Cp)    output-projection weight (transposed, padded)
    bp_ref:   (1, Cp)     output-projection bias (f32)
    aseg_ref: (Cp, H)     channel->head segment matrix, scaled by 1/sqrt(hs)
    aexp_ref: (H, Cp)     head->channel 0/1 expansion matrix
    o_ref:    (M, Cp)     output rows (f32)
    """
    m_rows = x_ref.shape[0]
    h_pad = aseg_ref.shape[1]

    x2 = x_ref[...]

    # Fused Q/K/V projection: one MXU launch, f32 accumulation, one bias add.
    qkv = jnp.dot(x2, wqkv_ref[...], preferred_element_type=jnp.float32)
    qkv = qkv + bqkv_ref[...]
    q = qkv[:, :cp]
    k = qkv[:, cp:2 * cp]
    v = qkv[:, 2 * cp:]

    a_seg = aseg_ref[...]
    a_exp = aexp_ref[...]

    # Within-sequence position of each flattened row (band mask is row-only).
    row_t = jax.lax.broadcasted_iota(jnp.int32, (m_rows, h_pad), 0) % seq_len
    neg = jnp.float32(-1e30)

    def shift_rows(z, d):
        # row r <- row r-d.  pltpu.roll wraps; the wrapped / cross-sequence rows
        # are exactly the rows with t < d, which the band mask kills below.
        return pltpu.roll(z, shift=d, axis=0) if d else z

    # Per-head banded scores: s_d[r, h] = (q_h[r] . k_h[r-d]) / sqrt(hs),
    # as a narrow (M,Cp)x(Cp,H) matmul in matmul_dtype (f32 accumulation).
    scores = []
    values = []
    for d in range(3):
        kd = shift_rows(k, d)
        sd = jnp.dot((q * kd).astype(matmul_dtype), a_seg,
                     preferred_element_type=jnp.float32)
        if d:
            sd = jnp.where(row_t >= d, sd, neg)   # token t cannot attend t-d < 0
        scores.append(sd)
        values.append(shift_rows(v, d))

    # 3-way softmax per (row, head), in f32.  exp(-1e30 - m) underflows to 0,
    # so masked / wrapped value rows contribute exactly nothing.
    m = jnp.maximum(jnp.maximum(scores[0], scores[1]), scores[2])
    exps = [jnp.exp(s - m) for s in scores]
    inv = pl.reciprocal(exps[0] + exps[1] + exps[2], approx=approx_recip)

    # Expand per-head probabilities back to channels (thin matmul) and combine
    # with the shifted values.
    y = jnp.zeros((m_rows, cp), jnp.float32)
    for d in range(3):
        p_full = jnp.dot((exps[d] * inv).astype(matmul_dtype), a_exp,
                         preferred_element_type=jnp.float32)
        y = y + p_full * values[d]

    out = jnp.dot(y.astype(matmul_dtype), wp_ref[...],
                  preferred_element_type=jnp.float32) + bp_ref[...]
    o_ref[...] = out.astype(o_ref.dtype)


def _pick_block_batch(B, T, sub):
    """~256 flattened rows per grid step (fills the MXU M dim on v6e/v7x,
    >=128 on v5e) while keeping >=2 grid steps when the batch is big enough.
    Never silently degrades to M = T rows: B gets padded instead."""
    bt = max(1, 256 // T)
    if B < 2 * bt:
        bt = -(-B // 2) if B * T >= 256 else B
    bt = max(1, min(bt, B))
    g = sub // math.gcd(T, sub)          # granularity so (bt*T) % sub == 0
    return -(-bt // g) * g


def trigram_attention(x, params, n_head, *, matmul_dtype=jnp.bfloat16,
                      block_batch=None):
    """x: (B, T, C) float32.  params follow the PyTorch Linear convention
    (y = x @ W.T + b, W of shape (C, C))."""
    B, T, C = x.shape
    assert C % n_head == 0
    hs = C // n_head
    LANE = 128
    Cp = -(-C // LANE) * LANE
    H = -(-n_head // LANE) * LANE        # padded head lanes (>= 128)
    f32 = jnp.float32

    # ---- wrapper-side glue: transpose / zero-pad / cast parameters ----------
    def pad_wt(w):
        wt = jnp.asarray(w, f32).T
        return jnp.pad(wt, ((0, Cp - C), (0, Cp - C)))

    def pad_b(b):
        return jnp.pad(jnp.asarray(b, f32), (0, Cp - C))

    # Fused Q|K|V weight (Cp, 3Cp) and bias (1, 3Cp); padded rows/cols are 0,
    # so the visible output channels are unchanged.
    wqkv = jnp.concatenate(
        [pad_wt(params["wq"]), pad_wt(params["wk"]), pad_wt(params["wv"])],
        axis=1).astype(matmul_dtype)
    bqkv = jnp.concatenate(
        [pad_b(params["bq"]), pad_b(params["bk"]), pad_b(params["bv"])]
    ).reshape(1, 3 * Cp)
    wp = pad_wt(params["wp"]).astype(matmul_dtype)
    bp = pad_b(params["bp"]).reshape(1, Cp)

    # Channel->head segment matrix (pre-scaled by 1/sqrt(hs)) and the 0/1
    # head->channel expansion matrix; padded heads / channels are zero.
    head_id = np.arange(C) // hs
    seg = np.zeros((Cp, H), np.float32)
    seg[np.arange(C), head_id] = 1.0 / np.sqrt(hs)
    expand = np.zeros((H, Cp), np.float32)
    expand[head_id, np.arange(C)] = 1.0
    a_seg = jnp.asarray(seg).astype(matmul_dtype)
    a_exp = jnp.asarray(expand).astype(matmul_dtype)

    # ---- batch tiling: pad B instead of accepting a degenerate tile ---------
    sub = 16 if matmul_dtype == jnp.bfloat16 else 8   # sublane pack of x
    if block_batch is None:
        bt = _pick_block_batch(B, T, sub)
    else:
        bt = block_batch
        assert (bt * T) % 8 == 0, "block_batch*T must be a multiple of 8"
    b_pad = -(-B // bt) * bt
    n_steps = b_pad // bt
    m_rows = bt * T

    # x: pad batch + channels, cast the MXU operand dtype already in HBM
    # (halves the x DMA bytes on the bf16 path), flatten to a 2-D slab.
    x_p = jnp.pad(x.astype(f32), ((0, b_pad - B), (0, 0), (0, Cp - C)))
    x2d = x_p.reshape(b_pad * T, Cp).astype(matmul_dtype)

    kernel = functools.partial(
        trigram_attn_kernel, seq_len=T, cp=Cp, matmul_dtype=matmul_dtype,
        approx_recip=(matmul_dtype == jnp.bfloat16))

    dsize = jnp.dtype(matmul_dtype).itemsize
    vmem_est = (
        2 * m_rows * Cp * dsize            # x block (double-buffered)
        + 2 * m_rows * Cp * 4              # out block (double-buffered)
        + 4 * Cp * Cp * dsize              # fused QKV + proj weights
        + 2 * Cp * H * dsize               # segment + expansion matrices
        + 4 * Cp * 4                       # biases
        + 16 * m_rows * Cp * 4)            # f32 in-kernel temporaries (margin)
    vmem_limit = int(min(max(vmem_est, 32 * 1024 * 1024), 100 * 1024 * 1024))

    def build_and_run(single_buffer_consts):
        const_kw = ({"pipeline_mode": pl.Buffered(1)}
                    if single_buffer_consts else {})
        io_spec = pl.BlockSpec((m_rows, Cp), lambda i: (i, 0))
        grid_spec = pltpu.PrefetchScalarGridSpec(
            num_scalar_prefetch=0,
            grid=(n_steps,),
            in_specs=[
                io_spec,                                                  # x
                pl.BlockSpec((Cp, 3 * Cp), lambda i: (0, 0), **const_kw),  # Wqkv
                pl.BlockSpec((1, 3 * Cp), lambda i: (0, 0), **const_kw),   # bqkv
                pl.BlockSpec((Cp, Cp), lambda i: (0, 0), **const_kw),      # Wp
                pl.BlockSpec((1, Cp), lambda i: (0, 0), **const_kw),       # bp
                pl.BlockSpec((Cp, H), lambda i: (0, 0), **const_kw),       # seg
                pl.BlockSpec((H, Cp), lambda i: (0, 0), **const_kw),       # expand
            ],
            out_specs=io_spec,
        )
        return pl.pallas_call(
            kernel,
            out_shape=jax.ShapeDtypeStruct((b_pad * T, Cp), jnp.float32),
            grid_spec=grid_spec,
            compiler_params=pltpu.CompilerParams(
                dimension_semantics=("parallel",),
                vmem_limit_bytes=vmem_limit),
        )(x2d, wqkv, bqkv, wp, bp, a_seg, a_exp)

    try:
        out2d = build_and_run(True)
    except Exception:
        # Fallback if this JAX build does not accept single-buffered
        # (pl.Buffered(1)) constant operands: default double buffering.
        out2d = build_and_run(False)

    return out2d.reshape(b_pad, T, Cp)[:B, :, :C]


def trigram_attention_ref(x, params, n_head):
    """Pure-JAX reference mirroring the PyTorch forward exactly (f32)."""
    B, T, C = x.shape
    hs = C // n_head
    scale = 1.0 / np.sqrt(hs)

    def lin(x, w, b):
        return x @ w.T + b

    q = lin(x, params["wq"], params["bq"]).reshape(B, T, n_head, hs).transpose(0, 2, 1, 3)
    k = lin(x, params["wk"], params["bk"]).reshape(B, T, n_head, hs).transpose(0, 2, 1, 3)
    v = lin(x, params["wv"], params["bv"]).reshape(B, T, n_head, hs).transpose(0, 2, 1, 3)

    i = np.arange(T)[:, None]
    j = np.arange(T)[None, :]
    mask = (j <= i) & (i - j <= 2)
    mask = jnp.asarray(mask)[None, None]

    att = jnp.einsum("bhtd,bhsd->bhts", q, k) * scale
    att = jnp.where(mask, att, -jnp.inf)
    att = jax.nn.softmax(att, axis=-1)
    y = jnp.einsum("bhts,bhsd->bhtd", att, v)
    y = y.transpose(0, 2, 1, 3).reshape(B, T, C)
    return lin(y, params["wp"], params["bp"])


def make_params(key, n_embd):
    """Deterministic synthetic parameters (PyTorch Linear shapes)."""
    ks = jax.random.split(key, 8)
    s = 1.0 / np.sqrt(n_embd)
    return {
        "wq": jax.random.normal(ks[0], (n_embd, n_embd), jnp.float32) * s,
        "bq": jax.random.normal(ks[1], (n_embd,), jnp.float32) * s,
        "wk": jax.random.normal(ks[2], (n_embd, n_embd), jnp.float32) * s,
        "bk": jax.random.normal(ks[3], (n_embd,), jnp.float32) * s,
        "wv": jax.random.normal(ks[4], (n_embd, n_embd), jnp.float32) * s,
        "bv": jax.random.normal(ks[5], (n_embd,), jnp.float32) * s,
        "wp": jax.random.normal(ks[6], (n_embd, n_embd), jnp.float32) * s,
        "bp": jax.random.normal(ks[7], (n_embd,), jnp.float32) * s,
    }


if __name__ == "__main__":
    B, T, C, n_head = 2, 8, 32, 4

    key = jax.random.PRNGKey(0)
    kx, kp = jax.random.split(key)
    x = jax.random.normal(kx, (B, T, C), jnp.float32)
    params = make_params(kp, C)

    ref = trigram_attention_ref(x, params, n_head)

    # Exact path (f32 MXU operands) — tight check of the band / narrow-N rewrite.
    out_f32 = jax.block_until_ready(
        trigram_attention(x, params, n_head, matmul_dtype=jnp.float32))
    np.testing.assert_allclose(np.asarray(out_f32), np.asarray(ref),
                               rtol=1e-3, atol=1e-3)

    # Performance path (bf16 MXU operands, f32 accumulation) — looser check.
    out_bf16 = jax.block_until_ready(
        trigram_attention(x, params, n_head, matmul_dtype=jnp.bfloat16))
    np.testing.assert_allclose(np.asarray(out_bf16), np.asarray(ref),
                               rtol=5e-2, atol=5e-2)

    print("KERNEL_OK")
</pallas_src>

<mosaic_0001>
module attributes {stable_mosaic.version = 11 : i64} {
  func.func @trigram_attn_kernel(%arg0: i32, %arg1: memref<16x128xf32, #tpu.memory_space<vmem>>, %arg2: memref<128x384xf32, #tpu.memory_space<vmem>>, %arg3: memref<1x384xf32, #tpu.memory_space<vmem>>, %arg4: memref<128x128xf32, #tpu.memory_space<vmem>>, %arg5: memref<1x128xf32, #tpu.memory_space<vmem>>, %arg6: memref<128x128xf32, #tpu.memory_space<vmem>>, %arg7: memref<128x128xf32, #tpu.memory_space<vmem>>, %arg8: memref<16x128xf32, #tpu.memory_space<vmem>>) attributes {dimension_semantics = [#tpu.dimension_semantics<parallel>], iteration_bounds = array<i64: 1>, scalar_prefetch = 0 : i64, scratch_operands = 0 : i64, tpu.core_type = #tpu.core_type<tc>, window_params = [{transform_indices = @transform_0, window_bounds = array<i64: 16, 128>}, {pipeline_mode = #tpu.pipeline_mode<synchronous>, transform_indices = @transform_1, window_bounds = array<i64: 128, 384>}, {pipeline_mode = #tpu.pipeline_mode<synchronous>, transform_indices = @transform_2, window_bounds = array<i64: 1, 384>}, {pipeline_mode = #tpu.pipeline_mode<synchronous>, transform_indices = @transform_3, window_bounds = array<i64: 128, 128>}, {pipeline_mode = #tpu.pipeline_mode<synchronous>, transform_indices = @transform_4, window_bounds = array<i64: 1, 128>}, {pipeline_mode = #tpu.pipeline_mode<synchronous>, transform_indices = @transform_5, window_bounds = array<i64: 128, 128>}, {pipeline_mode = #tpu.pipeline_mode<synchronous>, transform_indices = @transform_6, window_bounds = array<i64: 128, 128>}, {transform_indices = @transform_7, window_bounds = array<i64: 16, 128>}]} {
    %c0 = arith.constant 0 : index
    %c0_0 = arith.constant 0 : index
    %0 = vector.load %arg1[%c0, %c0_0] : memref<16x128xf32, #tpu.memory_space<vmem>>, vector<16x128xf32>
    %c0_1 = arith.constant 0 : index
    %c0_2 = arith.constant 0 : index
    %1 = vector.load %arg2[%c0_1, %c0_2] : memref<128x384xf32, #tpu.memory_space<vmem>>, vector<128x384xf32>
    %cst = arith.constant dense<0.000000e+00> : vector<16x384xf32>
    %2 = tpu.matmul %0, %1, %cst {dimension_numbers = #tpu.dot_dimension_numbers<[1], [0], [0], [1], [0, 0, 1, 1], [], []>} : vector<16x128xf32>, vector<128x384xf32>, vector<16x384xf32> -> vector<16x384xf32>
    %c0_3 = arith.constant 0 : index
    %c0_4 = arith.constant 0 : index
    %3 = vector.load %arg3[%c0_3, %c0_4] : memref<1x384xf32, #tpu.memory_space<vmem>>, vector<1x384xf32>
    %4 = vector.broadcast %3 : vector<1x384xf32> to vector<16x384xf32>
    %5 = arith.addf %2, %4 : vector<16x384xf32>
    %6 = vector.extract_strided_slice %5 {offsets = [0, 0], sizes = [16, 128], strides = [1, 1]} : vector<16x384xf32> to vector<16x128xf32>
    %7 = vector.extract_strided_slice %5 {offsets = [0, 128], sizes = [16, 128], strides = [1, 1]} : vector<16x384xf32> to vector<16x128xf32>
    %8 = vector.extract_strided_slice %5 {offsets = [0, 256], sizes = [16, 128], strides = [1, 1]} : vector<16x384xf32> to vector<16x128xf32>
    %c0_5 = arith.constant 0 : index
    %c0_6 = arith.constant 0 : index
    %9 = vector.load %arg6[%c0_5, %c0_6] : memref<128x128xf32, #tpu.memory_space<vmem>>, vector<128x128xf32>
    %c0_7 = arith.constant 0 : index
    %c0_8 = arith.constant 0 : index
    %10 = vector.load %arg7[%c0_7, %c0_8] : memref<128x128xf32, #tpu.memory_space<vmem>>, vector<128x128xf32>
    %11 = tpu.iota {dimensions = array<i32: 0>} : vector<16x128xi32>
    %c8_i32 = arith.constant 8 : i32
    %c0_i32 = arith.constant 0 : i32
    %12 = arith.cmpi eq, %c8_i32, %c0_i32 : i32
    %c1_i32 = arith.constant 1 : i32
    %13 = arith.select %12, %c1_i32, %c8_i32 : i32
    %14 = vector.broadcast %13 : i32 to vector<16x128xi32>
    %15 = arith.remsi %11, %14 : vector<16x128xi32>
    %c0_i32_9 = arith.constant 0 : i32
    %16 = vector.broadcast %c0_i32_9 : i32 to vector<16x128xi32>
    %17 = arith.cmpi ne, %15, %16 : vector<16x128xi32>
    %c0_i32_10 = arith.constant 0 : i32
    %18 = vector.broadcast %c0_i32_10 : i32 to vector<16x128xi32>
    %19 = arith.cmpi slt, %15, %18 : vector<16x128xi32>
    %c0_i32_11 = arith.constant 0 : i32
    %20 = arith.cmpi slt, %13, %c0_i32_11 : i32
    %21 = vector.broadcast %20 : i1 to vector<16x128xi1>
    %22 = vector.broadcast %21 : vector<16x128xi1> to vector<16x128xi1>
    %23 = arith.xori %19, %22 : vector<16x128xi1>
    %24 = arith.andi %23, %17 : vector<16x128xi1>
    %25 = vector.broadcast %13 : i32 to vector<16x128xi32>
    %26 = arith.addi %15, %25 : vector<16x128xi32>
    %27 = arith.select %24, %26, %15 : vector<16x128xi1>, vector<16x128xi32>
    %28 = arith.mulf %6, %7 : vector<16x128xf32>
    %cst_12 = arith.constant dense<0.000000e+00> : vector<16x128xf32>
    %29 = tpu.matmul %28, %9, %cst_12 {dimension_numbers = #tpu.dot_dimension_numbers<[1], [0], [0], [1], [0, 0, 1, 1], [], []>} : vector<16x128xf32>, vector<128x128xf32>, vector<16x128xf32> -> vector<16x128xf32>
    %c1_i32_13 = arith.constant 1 : i32
    %30 = tpu.dynamic_rotate %7 by %c1_i32_13 dim 0 : vector<16x128xf32>, i32 -> vector<16x128xf32>
    %31 = arith.mulf %6, %30 : vector<16x128xf32>
    %cst_14 = arith.constant dense<0.000000e+00> : vector<16x128xf32>
    %32 = tpu.matmul %31, %9, %cst_14 {dimension_numbers = #tpu.dot_dimension_numbers<[1], [0], [0], [1], [0, 0, 1, 1], [], []>} : vector<16x128xf32>, vector<128x128xf32>, vector<16x128xf32> -> vector<16x128xf32>
    %c1_i32_15 = arith.constant 1 : i32
    %33 = vector.broadcast %c1_i32_15 : i32 to vector<16x128xi32>
    %34 = arith.cmpi sge, %27, %33 : vector<16x128xi32>
    %cst_16 = arith.constant -1.000000e+30 : f32
    %35 = vector.broadcast %cst_16 : f32 to vector<16x128xf32>
    %36 = arith.select %34, %32, %35 : vector<16x128xi1>, vector<16x128xf32>
    %c1_i32_17 = arith.constant 1 : i32
    %37 = tpu.dynamic_rotate %8 by %c1_i32_17 dim 0 : vector<16x128xf32>, i32 -> vector<16x128xf32>
    %c2_i32 = arith.constant 2 : i32
    %38 = tpu.dynamic_rotate %7 by %c2_i32 dim 0 : vector<16x128xf32>, i32 -> vector<16x128xf32>
    %39 = arith.mulf %6, %38 : vector<16x128xf32>
    %cst_18 = arith.constant dense<0.000000e+00> : vector<16x128xf32>
    %40 = tpu.matmul %39, %9, %cst_18 {dimension_numbers = #tpu.dot_dimension_numbers<[1], [0], [0], [1], [0, 0, 1, 1], [], []>} : vector<16x128xf32>, vector<128x128xf32>, vector<16x128xf32> -> vector<16x128xf32>
    %c2_i32_19 = arith.constant 2 : i32
    %41 = vector.broadcast %c2_i32_19 : i32 to vector<16x128xi32>
    %42 = arith.cmpi sge, %27, %41 : vector<16x128xi32>
    %cst_20 = arith.constant -1.000000e+30 : f32
    %43 = vector.broadcast %cst_20 : f32 to vector<16x128xf32>
    %44 = arith.select %42, %40, %43 : vector<16x128xi1>, vector<16x128xf32>
    %c2_i32_21 = arith.constant 2 : i32
    %45 = tpu.dynamic_rotate %8 by %c2_i32_21 dim 0 : vector<16x128xf32>, i32 -> vector<16x128xf32>
    %46 = arith.maximumf %29, %36 : vector<16x128xf32>
    %47 = arith.maximumf %46, %44 : vector<16x128xf32>
    %48 = arith.subf %29, %47 : vector<16x128xf32>
    %49 = math.exp %48 : vector<16x128xf32>
    %50 = arith.subf %36, %47 : vector<16x128xf32>
    %51 = math.exp %50 : vector<16x128xf32>
    %52 = arith.subf %44, %47 : vector<16x128xf32>
    %53 = math.exp %52 : vector<16x128xf32>
    %54 = arith.addf %49, %51 : vector<16x128xf32>
    %55 = arith.addf %54, %53 : vector<16x128xf32>
    %56 = tpu.reciprocal %55 : vector<16x128xf32> -> vector<16x128xf32>
    %cst_22 = arith.constant 0.000000e+00 : f32
    %57 = vector.broadcast %cst_22 : f32 to vector<16x128xf32>
    %58 = arith.mulf %49, %56 : vector<16x128xf32>
    %cst_23 = arith.constant dense<0.000000e+00> : vector<16x128xf32>
    %59 = tpu.matmul %58, %10, %cst_23 {dimension_numbers = #tpu.dot_dimension_numbers<[1], [0], [0], [1], [0, 0, 1, 1], [], []>} : vector<16x128xf32>, vector<128x128xf32>, vector<16x128xf32> -> vector<16x128xf32>
    %60 = arith.mulf %59, %8 : vector<16x128xf32>
    %61 = arith.addf %57, %60 : vector<16x128xf32>
    %62 = arith.mulf %51, %56 : vector<16x128xf32>
    %cst_24 = arith.constant dense<0.000000e+00> : vector<16x128xf32>
    %63 = tpu.matmul %62, %10, %cst_24 {dimension_numbers = #tpu.dot_dimension_numbers<[1], [0], [0], [1], [0, 0, 1, 1], [], []>} : vector<16x128xf32>, vector<128x128xf32>, vector<16x128xf32> -> vector<16x128xf32>
    %64 = arith.mulf %63, %37 : vector<16x128xf32>
    %65 = arith.addf %61, %64 : vector<16x128xf32>
    %66 = arith.mulf %53, %56 : vector<16x128xf32>
    %cst_25 = arith.constant dense<0.000000e+00> : vector<16x128xf32>
    %67 = tpu.matmul %66, %10, %cst_25 {dimension_numbers = #tpu.dot_dimension_numbers<[1], [0], [0], [1], [0, 0, 1, 1], [], []>} : vector<16x128xf32>, vector<128x128xf32>, vector<16x128xf32> -> vector<16x128xf32>
    %68 = arith.mulf %67, %45 : vector<16x128xf32>
    %69 = arith.addf %65, %68 : vector<16x128xf32>
    %c0_26 = arith.constant 0 : index
    %c0_27 = arith.constant 0 : index
    %70 = vector.load %arg4[%c0_26, %c0_27] : memref<128x128xf32, #tpu.memory_space<vmem>>, vector<128x128xf32>
    %cst_28 = arith.constant dense<0.000000e+00> : vector<16x128xf32>
    %71 = tpu.matmul %69, %70, %cst_28 {dimension_numbers = #tpu.dot_dimension_numbers<[1], [0], [0], [1], [0, 0, 1, 1], [], []>} : vector<16x128xf32>, vector<128x128xf32>, vector<16x128xf32> -> vector<16x128xf32>
    %c0_29 = arith.constant 0 : index
    %c0_30 = arith.constant 0 : index
    %72 = vector.load %arg5[%c0_29, %c0_30] : memref<1x128xf32, #tpu.memory_space<vmem>>, vector<1x128xf32>
    %73 = vector.broadcast %72 : vector<1x128xf32> to vector<16x128xf32>
    %74 = arith.addf %71, %73 : vector<16x128xf32>
    %c0_31 = arith.constant 0 : index
    %c0_32 = arith.constant 0 : index
    %75 = vector.load %arg8[%c0_31, %c0_32] : memref<16x128xf32, #tpu.memory_space<vmem>>, vector<16x128xf32>
    tpu.vector_store %arg8[%c0_31, %c0_32], %74 {strides = array<i32>} : memref<16x128xf32, #tpu.memory_space<vmem>>, vector<16x128xf32>,
    return
  }
  func.func @transform_0(%arg0: i32) -> (i32, i32) {
    %c0_i32 = arith.constant 0 : i32
    %c0_i32_0 = arith.constant 0 : i32
    return %arg0, %c0_i32 : i32, i32
  }
  func.func @transform_1(%arg0: i32) -> (i32, i32) {
    %c0_i32 = arith.constant 0 : i32
    %c0_i32_0 = arith.constant 0 : i32
    %c0_i32_1 = arith.constant 0 : i32
    return %c0_i32, %c0_i32_0 : i32, i32
  }
  func.func @transform_2(%arg0: i32) -> (i32, i32) {
    %c0_i32 = arith.constant 0 : i32
    %c0_i32_0 = arith.constant 0 : i32
    %c0_i32_1 = arith.constant 0 : i32
    return %c0_i32, %c0_i32_0 : i32, i32
  }
  func.func @transform_3(%arg0: i32) -> (i32, i32) {
    %c0_i32 = arith.constant 0 : i32
    %c0_i32_0 = arith.constant 0 : i32
    %c0_i32_1 = arith.constant 0 : i32
    return %c0_i32, %c0_i32_0 : i32, i32
  }
  func.func @transform_4(%arg0: i32) -> (i32, i32) {
    %c0_i32 = arith.constant 0 : i32
    %c0_i32_0 = arith.constant 0 : i32
    %c0_i32_1 = arith.constant 0 : i32
    return %c0_i32, %c0_i32_0 : i32, i32
  }
  func.func @transform_5(%arg0: i32) -> (i32, i32) {
    %c0_i32 = arith.constant 0 : i32
    %c0_i32_0 = arith.constant 0 : i32
    %c0_i32_1 = arith.constant 0 : i32
    return %c0_i32, %c0_i32_0 : i32, i32
  }
  func.func @transform_6(%arg0: i32) -> (i32, i32) {
    %c0_i32 = arith.constant 0 : i32
    %c0_i32_0 = arith.constant 0 : i32
    %c0_i32_1 = arith.constant 0 : i32
    return %c0_i32, %c0_i32_0 : i32, i32
  }
  func.func @transform_7(%arg0: i32) -> (i32, i32) {
    %c0_i32 = arith.constant 0 : i32
    %c0_i32_0 = arith.constant 0 : i32
    return %arg0, %c0_i32 : i32, i32
  }
}

module attributes {stable_mosaic.version = 11 : i64} {
  func.func @trigram_attn_kernel(%arg0: i32, %arg1: memref<16x128xf32, #tpu.memory_space<vmem>>, %arg2: memref<128x384xf32, #tpu.memory_space<vmem>>, %arg3: memref<1x384xf32, #tpu.memory_space<vmem>>, %arg4: memref<128x128xf32, #tpu.memory_space<vmem>>, %arg5: memref<1x128xf32, #tpu.memory_space<vmem>>, %arg6: memref<128x128xf32, #tpu.memory_space<vmem>>, %arg7: memref<128x128xf32, #tpu.memory_space<vmem>>, %arg8: memref<16x128xf32, #tpu.memory_space<vmem>>) attributes {dimension_semantics = [#tpu.dimension_semantics<parallel>], iteration_bounds = array<i64: 1>, scalar_prefetch = 0 : i64, scratch_operands = 0 : i64, tpu.core_type = #tpu.core_type<tc>, window_params = [{transform_indices = @transform_0, window_bounds = array<i64: 16, 128>}, {pipeline_mode = #tpu.pipeline_mode<synchronous>, transform_indices = @transform_1, window_bounds = array<i64: 128, 384>}, {pipeline_mode = #tpu.pipeline_mode<synchronous>, transform_indices = @transform_2, window_bounds = array<i64: 1, 384>}, {pipeline_mode = #tpu.pipeline_mode<synchronous>, transform_indices = @transform_3, window_bounds = array<i64: 128, 128>}, {pipeline_mode = #tpu.pipeline_mode<synchronous>, transform_indices = @transform_4, window_bounds = array<i64: 1, 128>}, {pipeline_mode = #tpu.pipeline_mode<synchronous>, transform_indices = @transform_5, window_bounds = array<i64: 128, 128>}, {pipeline_mode = #tpu.pipeline_mode<synchronous>, transform_indices = @transform_6, window_bounds = array<i64: 128, 128>}, {transform_indices = @transform_7, window_bounds = array<i64: 16, 128>}]} {
    %c0 = arith.constant 0 : index
    %c0_0 = arith.constant 0 : index
    %0 = vector.load %arg1[%c0, %c0_0] : memref<16x128xf32, #tpu.memory_space<vmem>>, vector<16x128xf32>
    %c0_1 = arith.constant 0 : index
    %c0_2 = arith.constant 0 : index
    %1 = vector.load %arg2[%c0_1, %c0_2] : memref<128x384xf32, #tpu.memory_space<vmem>>, vector<128x384xf32>
    %cst = arith.constant dense<0.000000e+00> : vector<16x384xf32>
    %2 = tpu.matmul %0, %1, %cst {dimension_numbers = #tpu.dot_dimension_numbers<[1], [0], [0], [1], [0, 0, 1, 1], [], []>} : vector<16x128xf32>, vector<128x384xf32>, vector<16x384xf32> -> vector<16x384xf32>
    %c0_3 = arith.constant 0 : index
    %c0_4 = arith.constant 0 : index
    %3 = vector.load %arg3[%c0_3, %c0_4] : memref<1x384xf32, #tpu.memory_space<vmem>>, vector<1x384xf32>
    %4 = vector.broadcast %3 : vector<1x384xf32> to vector<16x384xf32>
    %5 = arith.addf %2, %4 : vector<16x384xf32>
    %6 = vector.extract_strided_slice %5 {offsets = [0, 0], sizes = [16, 128], strides = [1, 1]} : vector<16x384xf32> to vector<16x128xf32>
    %7 = vector.extract_strided_slice %5 {offsets = [0, 128], sizes = [16, 128], strides = [1, 1]} : vector<16x384xf32> to vector<16x128xf32>
    %8 = vector.extract_strided_slice %5 {offsets = [0, 256], sizes = [16, 128], strides = [1, 1]} : vector<16x384xf32> to vector<16x128xf32>
    %c0_5 = arith.constant 0 : index
    %c0_6 = arith.constant 0 : index
    %9 = vector.load %arg6[%c0_5, %c0_6] : memref<128x128xf32, #tpu.memory_space<vmem>>, vector<128x128xf32>
    %c0_7 = arith.constant 0 : index
    %c0_8 = arith.constant 0 : index
    %10 = vector.load %arg7[%c0_7, %c0_8] : memref<128x128xf32, #tpu.memory_space<vmem>>, vector<128x128xf32>
    %11 = tpu.iota {dimensions = array<i32: 0>} : vector<16x128xi32>
    %c8_i32 = arith.constant 8 : i32
    %c0_i32 = arith.constant 0 : i32
    %12 = arith.cmpi eq, %c8_i32, %c0_i32 : i32
    %c1_i32 = arith.constant 1 : i32
    %13 = arith.select %12, %c1_i32, %c8_i32 : i32
    %14 = vector.broadcast %13 : i32 to vector<16x128xi32>
    %15 = arith.remsi %11, %14 : vector<16x128xi32>
    %c0_i32_9 = arith.constant 0 : i32
    %16 = vector.broadcast %c0_i32_9 : i32 to vector<16x128xi32>
    %17 = arith.cmpi ne, %15, %16 : vector<16x128xi32>
    %c0_i32_10 = arith.constant 0 : i32
    %18 = vector.broadcast %c0_i32_10 : i32 to vector<16x128xi32>
    %19 = arith.cmpi slt, %15, %18 : vector<16x128xi32>
    %c0_i32_11 = arith.constant 0 : i32
    %20 = arith.cmpi slt, %13, %c0_i32_11 : i32
    %21 = vector.broadcast %20 : i1 to vector<16x128xi1>
    %22 = vector.broadcast %21 : vector<16x128xi1> to vector<16x128xi1>
    %23 = arith.xori %19, %22 : vector<16x128xi1>
    %24 = arith.andi %23, %17 : vector<16x128xi1>
    %25 = vector.broadcast %13 : i32 to vector<16x128xi32>
    %26 = arith.addi %15, %25 : vector<16x128xi32>
    %27 = arith.select %24, %26, %15 : vector<16x128xi1>, vector<16x128xi32>
    %28 = arith.mulf %6, %7 : vector<16x128xf32>
    %cst_12 = arith.constant dense<0.000000e+00> : vector<16x128xf32>
    %29 = tpu.matmul %28, %9, %cst_12 {dimension_numbers = #tpu.dot_dimension_numbers<[1], [0], [0], [1], [0, 0, 1, 1], [], []>} : vector<16x128xf32>, vector<128x128xf32>, vector<16x128xf32> -> vector<16x128xf32>
    %c1_i32_13 = arith.constant 1 : i32
    %30 = tpu.dynamic_rotate %7 by %c1_i32_13 dim 0 : vector<16x128xf32>, i32 -> vector<16x128xf32>
    %31 = arith.mulf %6, %30 : vector<16x128xf32>
    %cst_14 = arith.constant dense<0.000000e+00> : vector<16x128xf32>
    %32 = tpu.matmul %31, %9, %cst_14 {dimension_numbers = #tpu.dot_dimension_numbers<[1], [0], [0], [1], [0, 0, 1, 1], [], []>} : vector<16x128xf32>, vector<128x128xf32>, vector<16x128xf32> -> vector<16x128xf32>
    %c1_i32_15 = arith.constant 1 : i32
    %33 = vector.broadcast %c1_i32_15 : i32 to vector<16x128xi32>
    %34 = arith.cmpi sge, %27, %33 : vector<16x128xi32>
    %cst_16 = arith.constant -1.000000e+30 : f32
    %35 = vector.broadcast %cst_16 : f32 to vector<16x128xf32>
    %36 = arith.select %34, %32, %35 : vector<16x128xi1>, vector<16x128xf32>
    %c1_i32_17 = arith.constant 1 : i32
    %37 = tpu.dynamic_rotate %8 by %c1_i32_17 dim 0 : vector<16x128xf32>, i32 -> vector<16x128xf32>
    %c2_i32 = arith.constant 2 : i32
    %38 = tpu.dynamic_rotate %7 by %c2_i32 dim 0 : vector<16x128xf32>, i32 -> vector<16x128xf32>
    %39 = arith.mulf %6, %38 : vector<16x128xf32>
    %cst_18 = arith.constant dense<0.000000e+00> : vector<16x128xf32>
    %40 = tpu.matmul %39, %9, %cst_18 {dimension_numbers = #tpu.dot_dimension_numbers<[1], [0], [0], [1], [0, 0, 1, 1], [], []>} : vector<16x128xf32>, vector<128x128xf32>, vector<16x128xf32> -> vector<16x128xf32>
    %c2_i32_19 = arith.constant 2 : i32
    %41 = vector.broadcast %c2_i32_19 : i32 to vector<16x128xi32>
    %42 = arith.cmpi sge, %27, %41 : vector<16x128xi32>
    %cst_20 = arith.constant -1.000000e+30 : f32
    %43 = vector.broadcast %cst_20 : f32 to vector<16x128xf32>
    %44 = arith.select %42, %40, %43 : vector<16x128xi1>, vector<16x128xf32>
    %c2_i32_21 = arith.constant 2 : i32
    %45 = tpu.dynamic_rotate %8 by %c2_i32_21 dim 0 : vector<16x128xf32>, i32 -> vector<16x128xf32>
    %46 = arith.maximumf %29, %36 : vector<16x128xf32>
    %47 = arith.maximumf %46, %44 : vector<16x128xf32>
    %48 = arith.subf %29, %47 : vector<16x128xf32>
    %49 = math.exp %48 : vector<16x128xf32>
    %50 = arith.subf %36, %47 : vector<16x128xf32>
    %51 = math.exp %50 : vector<16x128xf32>
    %52 = arith.subf %44, %47 : vector<16x128xf32>
    %53 = math.exp %52 : vector<16x128xf32>
    %54 = arith.addf %49, %51 : vector<16x128xf32>
    %55 = arith.addf %54, %53 : vector<16x128xf32>
    %56 = tpu.reciprocal %55 : vector<16x128xf32> -> vector<16x128xf32>
    %cst_22 = arith.constant 0.000000e+00 : f32
    %57 = vector.broadcast %cst_22 : f32 to vector<16x128xf32>
    %58 = arith.mulf %49, %56 : vector<16x128xf32>
    %cst_23 = arith.constant dense<0.000000e+00> : vector<16x128xf32>
    %59 = tpu.matmul %58, %10, %cst_23 {dimension_numbers = #tpu.dot_dimension_numbers<[1], [0], [0], [1], [0, 0, 1, 1], [], []>} : vector<16x128xf32>, vector<128x128xf32>, vector<16x128xf32> -> vector<16x128xf32>
    %60 = arith.mulf %59, %8 : vector<16x128xf32>
    %61 = arith.addf %57, %60 : vector<16x128xf32>
    %62 = arith.mulf %51, %56 : vector<16x128xf32>
    %cst_24 = arith.constant dense<0.000000e+00> : vector<16x128xf32>
    %63 = tpu.matmul %62, %10, %cst_24 {dimension_numbers = #tpu.dot_dimension_numbers<[1], [0], [0], [1], [0, 0, 1, 1], [], []>} : vector<16x128xf32>, vector<128x128xf32>, vector<16x128xf32> -> vector<16x128xf32>
    %64 = arith.mulf %63, %37 : vector<16x128xf32>
    %65 = arith.addf %61, %64 : vector<16x128xf32>
    %66 = arith.mulf %53, %56 : vector<16x128xf32>
    %cst_25 = arith.constant dense<0.000000e+00> : vector<16x128xf32>
    %67 = tpu.matmul %66, %10, %cst_25 {dimension_numbers = #tpu.dot_dimension_numbers<[1], [0], [0], [1], [0, 0, 1, 1], [], []>} : vector<16x128xf32>, vector<128x128xf32>, vector<16x128xf32> -> vector<16x128xf32>
    %68 = arith.mulf %67, %45 : vector<16x128xf32>
    %69 = arith.addf %65, %68 : vector<16x128xf32>
    %c0_26 = arith.constant 0 : index
    %c0_27 = arith.constant 0 : index
    %70 = vector.load %arg4[%c0_26, %c0_27] : memref<128x128xf32, #tpu.memory_space<vmem>>, vector<128x128xf32>
    %cst_28 = arith.constant dense<0.000000e+00> : vector<16x128xf32>
    %71 = tpu.matmul %69, %70, %cst_28 {dimension_numbers = #tpu.dot_dimension_numbers<[1], [0], [0], [1], [0, 0, 1, 1], [], []>} : vector<16x128xf32>, vector<128x128xf32>, vector<16x128xf32> -> vector<16x128xf32>
    %c0_29 = arith.constant 0 : index
    %c0_30 = arith.constant 0 : index
    %72 = vector.load %arg5[%c0_29, %c0_30] : memref<1x128xf32, #tpu.memory_space<vmem>>, vector<1x128xf32>
    %73 = vector.broadcast %72 : vector<1x128xf32> to vector<16x128xf32>
    %74 = arith.addf %71, %73 : vector<16x128xf32>
    %c0_31 = arith.constant 0 : index
    %c0_32 = arith.constant 0 : index
    %75 = vector.load %arg8[%c0_31, %c0_32] : memref<16x128xf32, #tpu.memory_space<vmem>>, vector<16x128xf32>
    tpu.vector_store %arg8[%c0_31, %c0_32], %74 {strides = array<i32>} : memref<16x128xf32, #tpu.memory_space<vmem>>, vector<16x128xf32>,
    return
  }
  func.func @transform_0(%arg0: i32) -> (i32, i32) {
    %c0_i32 = arith.constant 0 : i32
    %c0_i32_0 = arith.constant 0 : i32
    return %arg0, %c0_i32 : i32, i32
  }
  func.func @transform_1(%arg0: i32) -> (i32, i32) {
    %c0_i32 = arith.constant 0 : i32
    %c0_i32_0 = arith.constant 0 : i32
    %c0_i32_1 = arith.constant 0 : i32
    return %c0_i32, %c0_i32_0 : i32, i32
  }
  func.func @transform_2(%arg0: i32) -> (i32, i32) {
    %c0_i32 = arith.constant 0 : i32
    %c0_i32_0 = arith.constant 0 : i32
    %c0_i32_1 = arith.constant 0 : i32
    return %c0_i32, %c0_i32_0 : i32, i32
  }
  func.func @transform_3(%arg0: i32) -> (i32, i32) {
    %c0_i32 = arith.constant 0 : i32
    %c0_i32_0 = arith.constant 0 : i32
    %c0_i32_1 = arith.constant 0 : i32
    return %c0_i32, %c0_i32_0 : i32, i32
  }
  func.func @transform_4(%arg0: i32) -> (i32, i32) {
    %c0_i32 = arith.constant 0 : i32
    %c0_i32_0 = arith.constant 0 : i32
    %c0_i32_1 = arith.constant 0 : i32
    return %c0_i32, %c0_i32_0 : i32, i32
  }
  func.func @transform_5(%arg0: i32) -> (i32, i32) {
    %c0_i32 = arith.constant 0 : i32
    %c0_i32_0 = arith.constant 0 : i32
    %c0_i32_1 = arith.constant 0 : i32
    return %c0_i32, %c0_i32_0 : i32, i32
  }
  func.func @transform_6(%arg0: i32) -> (i32, i32) {
    %c0_i32 = arith.constant 0 : i32
    %c0_i32_0 = arith.constant 0 : i32
    %c0_i32_1 = arith.constant 0 : i32
    return %c0_i32, %c0_i32_0 : i32, i32
  }
  func.func @transform_7(%arg0: i32) -> (i32, i32) {
    %c0_i32 = arith.constant 0 : i32
    %c0_i32_0 = arith.constant 0 : i32
    return %arg0, %c0_i32 : i32, i32
  }
}

</mosaic_0001>

<llo_original>
// kernel: tpu_custom_call.1
$region0: #{tpu_custom_call.1}
  #allocation0 [shape = 'u32[]', space=smem, size = 0x4, offset = 0x4, fixed_abs, tag = 'smem constant byte address 0x4 - core index']
  #allocation1 [shape = 'u32[144,128]{1,0:T(1,128)}', space=vmem, size = 0x12000, scoped, tag = 'internal scratch']
  %s0 = inlined_call_operand.hbm [shape: f32[16,128], index: 0, kind: input, shape index: {}]
  %s1 = inlined_call_operand.hbm [shape: f32[128,384], index: 1, kind: input, shape index: {}]
  %s2 = inlined_call_operand.vmem [shape: f32[1,384], index: 2, kind: input, shape index: {}]
  %s3 = inlined_call_operand.hbm [shape: f32[128,128], index: 3, kind: input, shape index: {}]
  %s4 = inlined_call_operand.vmem [shape: f32[1,128], index: 4, kind: input, shape index: {}]
  %s5 = inlined_call_operand.hbm [shape: f32[128,128], index: 5, kind: input, shape index: {}]
  %s6 = inlined_call_operand.hbm [shape: f32[128,128], index: 6, kind: input, shape index: {}]
  %s7 = inlined_call_operand.hbm [shape: f32[16,128], index: 7, kind: output, shape index: {}]
  %s8 = sld [smem:[#allocation0]]
  $region58: #{tpu_custom_call.1} parent=0
    _
  %s10 = ssub.s32 1, %s8
  %s11 = scalar_select 0, %s10, %s8
  $region1: #{tpu_custom_call.1} parent=0
    #allocation2 [shape = 'u8[8192]{0}', space=vmem, size = 0x2000, scoped, tag = 'input window, operand 0, single buffered']
    #allocation3 [shape = 's32[1]{0}', space=sflag, size = 0x4, scoped, tag = 'scoped memory for tpu_custom_call.1']
    #allocation4 [shape = 's32[1]{0}', space=sflag, size = 0x4, scoped, tag = 'scoped memory for tpu_custom_call.1']
    #allocation5 [shape = 'u8[196608]{0}', space=vmem, size = 0x30000, scoped, tag = 'input window, operand 1, single buffered']
    #allocation6 [shape = 's32[1]{0}', space=sflag, size = 0x4, scoped, tag = 'scoped memory for tpu_custom_call.1']
    #allocation7 [shape = 'u8[65536]{0}', space=vmem, size = 0x10000, scoped, tag = 'input window, operand 3, single buffered']
    #allocation8 [shape = 'u8[65536]{0}', space=vmem, size = 0x10000, scoped, tag = 'input window, operand 5, single buffered']
    #allocation9 [shape = 's32[1]{0}', space=sflag, size = 0x4, scoped, tag = 'scoped memory for tpu_custom_call.1']
    #allocation10 [shape = 'u8[65536]{0}', space=vmem, size = 0x10000, scoped, tag = 'input window, operand 6, single buffered']
    #allocation11 [shape = 'u8[8192]{0}', space=vmem, size = 0x2000, scoped, tag = 'output window, operand 0, single buffered']
    %12 = vsyncpa [#allocation3], 0
    %13 = vsyncpa [#allocation6], 0
    %14 = vsyncpa [#allocation9], 0
    %15 = vsyncpa [#allocation4], 0
    // Predicated region
    $region2: #{tpu_custom_call.1} parent=1 // pred_check
      _
    $region3: #{tpu_custom_call.1} parent=1 // pred_check_branch
      %17 = sbr.rel (0) target = $region5
    $region4: #{tpu_custom_call.1} parent=1 // pred_region
      %s19 = ssub.s32 256, 256
      %20 = vsyncadd [#allocation3], %s19
      %s21 = sshll.u32 [#allocation2], 4
      %s22 = int_to_ptr.vmem [resolvable:$true] %s21
      %27 = dma.hbm_to_vmem [thread:$0]  %s0, 256, %s22, [#allocation3], 128, 128, 8
    $region5: #{tpu_custom_call.1} parent=1 // pred_fallthru
      _
    // Predicated region
    $region6: #{tpu_custom_call.1} parent=1 // pred_check
      _
    $region7: #{tpu_custom_call.1} parent=1 // pred_check_branch
      %29 = sbr.rel (0) target = $region9
    $region8: #{tpu_custom_call.1} parent=1 // pred_region
      %s31 = ssub.s32 6144, 6144
      %32 = vsyncadd [#allocation6], %s31
      %s33 = sshll.u32 [#allocation5], 4
      %s34 = int_to_ptr.vmem [resolvable:$true] %s33
      %39 = dma.hbm_to_vmem [thread:$0]  %s1, 6144, %s34, [#allocation6], 384, 384, 24
    $region9: #{tpu_custom_call.1} parent=1 // pred_fallthru
      _
    // Predicated region
    $region10: #{tpu_custom_call.1} parent=1 // pred_check
      _
    $region11: #{tpu_custom_call.1} parent=1 // pred_check_branch
      %41 = sbr.rel (0) target = $region13
    $region12: #{tpu_custom_call.1} parent=1 // pred_region
      _
    $region13: #{tpu_custom_call.1} parent=1 // pred_fallthru
      _
    // Predicated region
    $region14: #{tpu_custom_call.1} parent=1 // pred_check
      _
    $region15: #{tpu_custom_call.1} parent=1 // pred_check_branch
      %43 = sbr.rel (0) target = $region17
    $region16: #{tpu_custom_call.1} parent=1 // pred_region
      %s45 = ssub.s32 2048, 2048
      %46 = vsyncadd [#allocation6], %s45
      %s47 = sshll.u32 [#allocation7], 4
      %s48 = int_to_ptr.vmem [resolvable:$true] %s47
      %53 = dma.hbm_to_vmem [thread:$0]  %s3, 2048, %s48, [#allocation6], 128, 128, 8
    $region17: #{tpu_custom_call.1} parent=1 // pred_fallthru
      _
    // Predicated region
    $region18: #{tpu_custom_call.1} parent=1 // pred_check
      _
    $region19: #{tpu_custom_call.1} parent=1 // pred_check_branch
      %55 = sbr.rel (0) target = $region21
    $region20: #{tpu_custom_call.1} parent=1 // pred_region
      _
    $region21: #{tpu_custom_call.1} parent=1 // pred_fallthru
      _
    // Predicated region
    $region22: #{tpu_custom_call.1} parent=1 // pred_check
      _
    $region23: #{tpu_custom_call.1} parent=1 // pred_check_branch
      %57 = sbr.rel (0) target = $region25
    $region24: #{tpu_custom_call.1} parent=1 // pred_region
      %s59 = ssub.s32 2048, 2048
      %60 = vsyncadd [#allocation9], %s59
      %s61 = sshll.u32 [#allocation8], 4
      %s62 = int_to_ptr.vmem [resolvable:$true] %s61
      %67 = dma.hbm_to_vmem [thread:$0]  %s5, 2048, %s62, [#allocation9], 128, 128, 8
    $region25: #{tpu_custom_call.1} parent=1 // pred_fallthru
      _
    // Predicated region
    $region26: #{tpu_custom_call.1} parent=1 // pred_check
      _
    $region27: #{tpu_custom_call.1} parent=1 // pred_check_branch
      %69 = sbr.rel (0) target = $region29
    $region28: #{tpu_custom_call.1} parent=1 // pred_region
      %s71 = ssub.s32 2048, 2048
      %72 = vsyncadd [#allocation9], %s71
      %s73 = sshll.u32 [#allocation10], 4
      %s74 = int_to_ptr.vmem [resolvable:$true] %s73
      %79 = dma.hbm_to_vmem [thread:$0]  %s6, 2048, %s74, [#allocation9], 128, 128, 8
    $region29: #{tpu_custom_call.1} parent=1 // pred_fallthru
      _
    // Predicated region
    $region30: #{tpu_custom_call.1} parent=1 // pred_check
      _
    $region31: #{tpu_custom_call.1} parent=1 // pred_check_branch
      %81 = sbr.rel (0) target = $region33
    $region32: #{tpu_custom_call.1} parent=1 // pred_region
      %82 = dma.done [#allocation3], 256
    $region33: #{tpu_custom_call.1} parent=1 // pred_fallthru
      _
    // Predicated region
    $region34: #{tpu_custom_call.1} parent=1 // pred_check
      _
    $region35: #{tpu_custom_call.1} parent=1 // pred_check_branch
      %84 = sbr.rel (0) target = $region37
    $region36: #{tpu_custom_call.1} parent=1 // pred_region
      %85 = dma.done [#allocation6], 6144
    $region37: #{tpu_custom_call.1} parent=1 // pred_fallthru
      _
    // Predicated region
    $region38: #{tpu_custom_call.1} parent=1 // pred_check
      _
    $region39: #{tpu_custom_call.1} parent=1 // pred_check_branch
      %87 = sbr.rel (0) target = $region41
    $region40: #{tpu_custom_call.1} parent=1 // pred_region
      %88 = dma.done [#allocation6], 2048
    $region41: #{tpu_custom_call.1} parent=1 // pred_fallthru
      _
    // Predicated region
    $region42: #{tpu_custom_call.1} parent=1 // pred_check
      _
    $region43: #{tpu_custom_call.1} parent=1 // pred_check_branch
      %90 = sbr.rel (0) target = $region45
    $region44: #{tpu_custom_call.1} parent=1 // pred_region
      %91 = dma.done [#allocation9], 2048
    $region45: #{tpu_custom_call.1} parent=1 // pred_fallthru
      _
    // Predicated region
    $region46: #{tpu_custom_call.1} parent=1 // pred_check
      _
    $region47: #{tpu_custom_call.1} parent=1 // pred_check_branch
      %93 = sbr.rel (0) target = $region49
    $region48: #{tpu_custom_call.1} parent=1 // pred_region
      %94 = dma.done [#allocation9], 2048
    $region49: #{tpu_custom_call.1} parent=1 // pred_fallthru
      _
    %v95 = vld [vmem:[#allocation2] sm:$0xff]
    %v96 = vld [vmem:[#allocation2 + $0x8] sm:$0xff]
    %v97 = vld [vmem:[#allocation5] sm:$0xff]
    %v98 = vld [vmem:[#allocation5 + $0x8] sm:$0xff]
    %v99 = vld [vmem:[#allocation5 + $0x10] sm:$0xff]
    %v100 = vld [vmem:[#allocation5 + $0x18] sm:$0xff]
    %v101 = vld [vmem:[#allocation5 + $0x20] sm:$0xff]
    %v102 = vld [vmem:[#allocation5 + $0x28] sm:$0xff]
    %v103 = vld [vmem:[#allocation5 + $0x30] sm:$0xff]
    %v104 = vld [vmem:[#allocation5 + $0x38] sm:$0xff]
    %v105 = vld [vmem:[#allocation5 + $0x40] sm:$0xff]
    %v106 = vld [vmem:[#allocation5 + $0x48] sm:$0xff]
    %v107 = vld [vmem:[#allocation5 + $0x50] sm:$0xff]
    %v108 = vld [vmem:[#allocation5 + $0x58] sm:$0xff]
    %v109 = vld [vmem:[#allocation5 + $0x60] sm:$0xff]
    %v110 = vld [vmem:[#allocation5 + $0x68] sm:$0xff]
    %v111 = vld [vmem:[#allocation5 + $0x70] sm:$0xff]
    %v112 = vld [vmem:[#allocation5 + $0x78] sm:$0xff]
    %v113 = vld [vmem:[#allocation5 + $0x80] sm:$0xff]
    %v114 = vld [vmem:[#allocation5 + $0x88] sm:$0xff]
    %v115 = vld [vmem:[#allocation5 + $0x90] sm:$0xff]
    %v116 = vld [vmem:[#allocation5 + $0x98] sm:$0xff]
    %v117 = vld [vmem:[#allocation5 + $0xa0] sm:$0xff]
    %v118 = vld [vmem:[#allocation5 + $0xa8] sm:$0xff]
    %v119 = vld [vmem:[#allocation5 + $0xb0] sm:$0xff]
    %v120 = vld [vmem:[#allocation5 + $0xb8] sm:$0xff]
    %v121 = vld [vmem:[#allocation5 + $0xc0] sm:$0xff]
    %v122 = vld [vmem:[#allocation5 + $0xc8] sm:$0xff]
    %v123 = vld [vmem:[#allocation5 + $0xd0] sm:$0xff]
    %v124 = vld [vmem:[#allocation5 + $0xd8] sm:$0xff]
    %v125 = vld [vmem:[#allocation5 + $0xe0] sm:$0xff]
    %v126 = vld [vmem:[#allocation5 + $0xe8] sm:$0xff]
    %v127 = vld [vmem:[#allocation5 + $0xf0] sm:$0xff]
    %v128 = vld [vmem:[#allocation5 + $0xf8] sm:$0xff]
    %v129 = vld [vmem:[#allocation5 + $0x100] sm:$0xff]
    %v130 = vld [vmem:[#allocation5 + $0x108] sm:$0xff]
    %v131 = vld [vmem:[#allocation5 + $0x110] sm:$0xff]
    %v132 = vld [vmem:[#allocation5 + $0x118] sm:$0xff]
    %v133 = vld [vmem:[#allocation5 + $0x120] sm:$0xff]
    %v134 = vld [vmem:[#allocation5 + $0x128] sm:$0xff]
    %v135 = vld [vmem:[#allocation5 + $0x130] sm:$0xff]
    %v136 = vld [vmem:[#allocation5 + $0x138] sm:$0xff]
    %v137 = vld [vmem:[#allocation5 + $0x140] sm:$0xff]
    %v138 = vld [vmem:[#allocation5 + $0x148] sm:$0xff]
    %v139 = vld [vmem:[#allocation5 + $0x150] sm:$0xff]
    %v140 = vld [vmem:[#allocation5 + $0x158] sm:$0xff]
    %v141 = vld [vmem:[#allocation5 + $0x160] sm:$0xff]
    %v142 = vld [vmem:[#allocation5 + $0x168] sm:$0xff]
    %v143 = vld [vmem:[#allocation5 + $0x170] sm:$0xff]
    %v144 = vld [vmem:[#allocation5 + $0x178] sm:$0xff]
    %v145 = vld [vmem:[%s2] sm:$0x7]
    %v147 = vlaneseq
    %v148 = vshrl.u32 %v147, 7
    %v149 = vsub.s32 0, %v148
    %v150 = vrot.slane %v145, %v149
    %v151 = vlaneseq
    %v152 = vshrl.u32 %v151, 7
    %v153 = vsub.s32 1, %v152
    %v154 = vrot.slane %v145, %v153
    %v155 = vlaneseq
    %v156 = vshrl.u32 %v155, 7
    %v157 = vsub.s32 2, %v156
    %v158 = vrot.slane %v145, %v157
    %162 = vmatprep.subr.mxu0 %v143
    %163 = vmatpush1.msra.mxu0 %v142
    %164 = vmatprep.subr.mxu0 %v140
    %165 = vmatpush1.msra.mxu0 %v139
    %166 = vmatprep.subr.mxu0 %v137
    %167 = vmatpush1.msra.mxu0 %v136
    %168 = vmatprep.subr.mxu0 %v134
    %169 = vmatpush1.msra.mxu0 %v133
    %170 = vmatprep.subr.mxu0 %v131
    %171 = vmatpush1.msra.mxu0 %v130
    %172 = vmatprep.subr.mxu0 %v128
    %173 = vmatpush1.msra.mxu0 %v127
    %174 = vmatprep.subr.mxu0 %v125
    %175 = vmatpush1.msra.mxu0 %v124
    %176 = vmatprep.subr.mxu0 %v122
    %177 = vmatpush1.msra.mxu0 %v121
    %178 = vmatprep.subr.mxu0 %v119
    %179 = vmatpush1.msra.mxu0 %v118
    %180 = vmatprep.subr.mxu0 %v116
    %181 = vmatpush1.msra.mxu0 %v115
    %182 = vmatprep.subr.mxu0 %v113
    %183 = vmatpush1.msra.mxu0 %v112
    %184 = vmatprep.subr.mxu0 %v110
    %185 = vmatpush1.msra.mxu0 %v109
    %186 = vmatprep.subr.mxu0 %v107
    %187 = vmatpush1.msra.mxu0 %v106
    %188 = vmatprep.subr.mxu0 %v104
    %189 = vmatpush1.msra.mxu0 %v103
    %190 = vmatprep.subr.mxu0 %v101
    %191 = vmatpush1.msra.mxu0 %v100
    %192 = vmatprep.subr.mxu0 %v98
    %193 = vmatpush1.msra.mxu0 %v97
    %194 = vmatprep.subr.mxu0 0.0
    %195 = vmatpush2.msra.mxu0 0.0
    %196 = vmatprep.subr.mxu0 0.0
    %197 = vmatpush2.msra.mxu0 0.0
    %198 = vmatprep.subr.mxu0 0.0
    %199 = vmatpush2.msra.mxu0 0.0
    %200 = vmatprep.subr.mxu0 0.0
    %201 = vmatpush2.msra.mxu0 0.0
    %202 = vmatprep.subr.mxu0 0.0
    %203 = vmatpush2.msra.mxu0 0.0
    %204 = vmatprep.subr.mxu0 0.0
    %205 = vmatpush2.msra.mxu0 0.0
    %206 = vmatprep.subr.mxu0 0.0
    %207 = vmatpush2.msra.mxu0 0.0
    %208 = vmatprep.subr.mxu0 0.0
    %209 = vmatpush2.msra.mxu0 0.0
    %210 = vmatprep.subr.mxu0 0.0
    %211 = vmatpush2.msra.mxu0 0.0
    %212 = vmatprep.subr.mxu0 0.0
    %213 = vmatpush2.msra.mxu0 0.0
    %214 = vmatprep.subr.mxu0 0.0
    %215 = vmatpush2.msra.mxu0 0.0
    %216 = vmatprep.subr.mxu0 0.0
    %217 = vmatpush2.msra.mxu0 0.0
    %218 = vmatprep.subr.mxu0 0.0
    %219 = vmatpush2.msra.mxu0 0.0
    %220 = vmatprep.subr.mxu0 0.0
    %221 = vmatpush2.msra.mxu0 0.0
    %222 = vmatprep.subr.mxu0 0.0
    %223 = vmatpush2.msra.mxu0 0.0
    %224 = vmatprep.subr.mxu0 0.0
    %225 = vmatpush2.msra.mxu0 0.0
    %226 = vmatprep.mubr.f32.mxu0 0.0
    %227 = vmatmul.mubr.f32.gmra.mxu0 %v95
    %v228 = vpop.f32.mrf.mxu0
    %v229 = vadd.f32 %v150, %v228
    %v230 = vpop.f32.mrf.mxu0
    %v231 = vadd.f32 %v154, %v230
    %232 = vmatprep.mubr.f32.mxu0 0.0
    %233 = vmatmul.mubr.f32.gmra.mxu0 %v96
    %v234 = vpop.f32.mrf.mxu0
    %v235 = vadd.f32 %v150, %v234
    %v236 = vpop.f32.mrf.mxu0
    %v237 = vadd.f32 %v154, %v236
    %238 = vdwg.mxu0
    %239 = vmatprep.subr.mxu0 0.0
    %240 = vmatpush1.msra.mxu0 %v144
    %241 = vmatprep.subr.mxu0 0.0
    %242 = vmatpush1.msra.mxu0 %v141
    %243 = vmatprep.subr.mxu0 0.0
    %244 = vmatpush1.msra.mxu0 %v138
    %245 = vmatprep.subr.mxu0 0.0
    %246 = vmatpush1.msra.mxu0 %v135
    %247 = vmatprep.subr.mxu0 0.0
    %248 = vmatpush1.msra.mxu0 %v132
    %249 = vmatprep.subr.mxu0 0.0
    %250 = vmatpush1.msra.mxu0 %v129
    %251 = vmatprep.subr.mxu0 0.0
    %252 = vmatpush1.msra.mxu0 %v126
    %253 = vmatprep.subr.mxu0 0.0
    %254 = vmatpush1.msra.mxu0 %v123
    %255 = vmatprep.subr.mxu0 0.0
    %256 = vmatpush1.msra.mxu0 %v120
    %257 = vmatprep.subr.mxu0 0.0
    %258 = vmatpush1.msra.mxu0 %v117
    %259 = vmatprep.subr.mxu0 0.0
    %260 = vmatpush1.msra.mxu0 %v114
    %261 = vmatprep.subr.mxu0 0.0
    %262 = vmatpush1.msra.mxu0 %v111
    %263 = vmatprep.subr.mxu0 0.0
    %264 = vmatpush1.msra.mxu0 %v108
    %265 = vmatprep.subr.mxu0 0.0
    %266 = vmatpush1.msra.mxu0 %v105
    %267 = vmatprep.subr.mxu0 0.0
    %268 = vmatpush1.msra.mxu0 %v102
    %269 = vmatprep.subr.mxu0 0.0
    %270 = vmatpush1.msra.mxu0 %v99
    %271 = vmatprep.subr.mxu0 0.0
    %272 = vmatpush2.msra.mxu0 0.0
    %273 = vmatprep.subr.mxu0 0.0
    %274 = vmatpush2.msra.mxu0 0.0
    %275 = vmatprep.subr.mxu0 0.0
    %276 = vmatpush2.msra.mxu0 0.0
    %277 = vmatprep.subr.mxu0 0.0
    %278 = vmatpush2.msra.mxu0 0.0
    %279 = vmatprep.subr.mxu0 0.0
    %280 = vmatpush2.msra.mxu0 0.0
    %281 = vmatprep.subr.mxu0 0.0
    %282 = vmatpush2.msra.mxu0 0.0
    %283 = vmatprep.subr.mxu0 0.0
    %284 = vmatpush2.msra.mxu0 0.0
    %285 = vmatprep.subr.mxu0 0.0
    %286 = vmatpush2.msra.mxu0 0.0
    %287 = vmatprep.subr.mxu0 0.0
    %288 = vmatpush2.msra.mxu0 0.0
    %289 = vmatprep.subr.mxu0 0.0
    %290 = vmatpush2.msra.mxu0 0.0
    %291 = vmatprep.subr.mxu0 0.0
    %292 = vmatpush2.msra.mxu0 0.0
    %293 = vmatprep.subr.mxu0 0.0
    %294 = vmatpush2.msra.mxu0 0.0
    %295 = vmatprep.subr.mxu0 0.0
    %296 = vmatpush2.msra.mxu0 0.0
    %297 = vmatprep.subr.mxu0 0.0
    %298 = vmatpush2.msra.mxu0 0.0
    %299 = vmatprep.subr.mxu0 0.0
    %300 = vmatpush2.msra.mxu0 0.0
    %301 = vmatprep.subr.mxu0 0.0
    %302 = vmatpush2.msra.mxu0 0.0
    %303 = vmatprep.mubr.f32.mxu0 0.0
    %304 = vmatmul.mubr.f32.gmra.mxu0 %v95
    %v305 = vpop.f32.mrf.mxu0
    %v306 = vadd.f32 %v158, %v305
    %v307 = vpop.f32.mrf.mxu0
    %308 = vmatprep.mubr.f32.mxu0 0.0
    %309 = vmatmul.mubr.f32.gmra.mxu0 %v96
    %v310 = vpop.f32.mrf.mxu0
    %v311 = vadd.f32 %v158, %v310
    %v312 = vpop.f32.mrf.mxu0
    %313 = vdwg.mxu0
    %v314 = vld [vmem:[#allocation8] sm:$0xff]
    %v315 = vld [vmem:[#allocation8 + $0x8] sm:$0xff]
    %v316 = vld [vmem:[#allocation8 + $0x10] sm:$0xff]
    %v317 = vld [vmem:[#allocation8 + $0x18] sm:$0xff]
    %v318 = vld [vmem:[#allocation8 + $0x20] sm:$0xff]
    %v319 = vld [vmem:[#allocation8 + $0x28] sm:$0xff]
    %v320 = vld [vmem:[#allocation8 + $0x30] sm:$0xff]
    %v321 = vld [vmem:[#allocation8 + $0x38] sm:$0xff]
    %v322 = vld [vmem:[#allocation8 + $0x40] sm:$0xff]
    %v323 = vld [vmem:[#allocation8 + $0x48] sm:$0xff]
    %v324 = vld [vmem:[#allocation8 + $0x50] sm:$0xff]
    %v325 = vld [vmem:[#allocation8 + $0x58] sm:$0xff]
    %v326 = vld [vmem:[#allocation8 + $0x60] sm:$0xff]
    %v327 = vld [vmem:[#allocation8 + $0x68] sm:$0xff]
    %v328 = vld [vmem:[#allocation8 + $0x70] sm:$0xff]
    %v329 = vld [vmem:[#allocation8 + $0x78] sm:$0xff]
    %v330 = vld [vmem:[#allocation10] sm:$0xff]
    %v331 = vld [vmem:[#allocation10 + $0x8] sm:$0xff]
    %v332 = vld [vmem:[#allocation10 + $0x10] sm:$0xff]
    %v333 = vld [vmem:[#allocation10 + $0x18] sm:$0xff]
    %v334 = vld [vmem:[#allocation10 + $0x20] sm:$0xff]
    %v335 = vld [vmem:[#allocation10 + $0x28] sm:$0xff]
    %v336 = vld [vmem:[#allocation10 + $0x30] sm:$0xff]
    %v337 = vld [vmem:[#allocation10 + $0x38] sm:$0xff]
    %v338 = vld [vmem:[#allocation10 + $0x40] sm:$0xff]
    %v339 = vld [vmem:[#allocation10 + $0x48] sm:$0xff]
    %v340 = vld [vmem:[#allocation10 + $0x50] sm:$0xff]
    %v341 = vld [vmem:[#allocation10 + $0x58] sm:$0xff]
    %v342 = vld [vmem:[#allocation10 + $0x60] sm:$0xff]
    %v343 = vld [vmem:[#allocation10 + $0x68] sm:$0xff]
    %v344 = vld [vmem:[#allocation10 + $0x70] sm:$0xff]
    %v345 = vld [vmem:[#allocation10 + $0x78] sm:$0xff]
    %v346 = vlaneseq
    %v347 = vshrl.u32 %v346, 7
    %v348 = vadd.s32 %v347, 8
    %vm349 = vcmp.lt.s32.totalorder %v347, 0
    %v350 = vsub.s32 0, %v347
    %v351 = vsel %vm349, %v350, %v347
    %v352 = vshrl.u32 %v351, 3
    %v353 = vand.u32 %v351, 7
    %v354 = vsub.s32 0, %v353
    %v355 = vsel %vm349, %v354, %v353
    %vm356 = vcmp.lt.s32.totalorder %v348, 0
    %v357 = vsub.s32 0, %v348
    %v358 = vsel %vm356, %v357, %v348
    %v359 = vshrl.u32 %v358, 3
    %v360 = vand.u32 %v358, 7
    %v361 = vsub.s32 0, %v360
    %v362 = vsel %vm356, %v361, %v360
    %vm363 = vcmp.ne.s32.totalorder %v355, 0
    %vm364 = vcmp.ne.s32.totalorder %v362, 0
    %vm365 = vcmp.lt.s32.totalorder %v355, 0
    %vm366 = vcmp.lt.s32.totalorder %v362, 0
    %vm367 = vmand %vm365, %vm363
    %vm368 = vmand %vm366, %vm364
    %v369 = vadd.s32 %v355, 8
    %v370 = vadd.s32 %v362, 8
    %v371 = vsel %vm367, %v369, %v355
    %v372 = vsel %vm368, %v370, %v362
    %v373 = vmul.f32 %v229, %v231
    %v374 = vmul.f32 %v235, %v237
    %375 = vmatprep.subr.mxu0 0.0
    %376 = vmatpush1.msra.mxu0 %v329
    %377 = vmatprep.subr.mxu0 0.0
    %378 = vmatpush1.msra.mxu0 %v328
    %379 = vmatprep.subr.mxu0 0.0
    %380 = vmatpush1.msra.mxu0 %v327
    %381 = vmatprep.subr.mxu0 0.0
    %382 = vmatpush1.msra.mxu0 %v326
    %383 = vmatprep.subr.mxu0 0.0
    %384 = vmatpush1.msra.mxu0 %v325
    %385 = vmatprep.subr.mxu0 0.0
    %386 = vmatpush1.msra.mxu0 %v324
    %387 = vmatprep.subr.mxu0 0.0
    %388 = vmatpush1.msra.mxu0 %v323
    %389 = vmatprep.subr.mxu0 0.0
    %390 = vmatpush1.msra.mxu0 %v322
    %391 = vmatprep.subr.mxu0 0.0
    %392 = vmatpush1.msra.mxu0 %v321
    %393 = vmatprep.subr.mxu0 0.0
    %394 = vmatpush1.msra.mxu0 %v320
    %395 = vmatprep.subr.mxu0 0.0
    %396 = vmatpush1.msra.mxu0 %v319
    %397 = vmatprep.subr.mxu0 0.0
    %398 = vmatpush1.msra.mxu0 %v318
    %399 = vmatprep.subr.mxu0 0.0
    %400 = vmatpush1.msra.mxu0 %v317
    %401 = vmatprep.subr.mxu0 0.0
    %402 = vmatpush1.msra.mxu0 %v316
    %403 = vmatprep.subr.mxu0 0.0
    %404 = vmatpush1.msra.mxu0 %v315
    %405 = vmatprep.subr.mxu0 0.0
    %406 = vmatpush1.msra.mxu0 %v314
    %407 = vmatprep.subr.mxu0 0.0
    %408 = vmatpush2.msra.mxu0 0.0
    %409 = vmatprep.subr.mxu0 0.0
    %410 = vmatpush2.msra.mxu0 0.0
    %411 = vmatprep.subr.mxu0 0.0
    %412 = vmatpush2.msra.mxu0 0.0
    %413 = vmatprep.subr.mxu0 0.0
    %414 = vmatpush2.msra.mxu0 0.0
    %415 = vmatprep.subr.mxu0 0.0
    %416 = vmatpush2.msra.mxu0 0.0
    %417 = vmatprep.subr.mxu0 0.0
    %418 = vmatpush2.msra.mxu0 0.0
    %419 = vmatprep.subr.mxu0 0.0
    %420 = vmatpush2.msra.mxu0 0.0
    %421 = vmatprep.subr.mxu0 0.0
    %422 = vmatpush2.msra.mxu0 0.0
    %423 = vmatprep.subr.mxu0 0.0
    %424 = vmatpush2.msra.mxu0 0.0
    %425 = vmatprep.subr.mxu0 0.0
    %426 = vmatpush2.msra.mxu0 0.0
    %427 = vmatprep.subr.mxu0 0.0
    %428 = vmatpush2.msra.mxu0 0.0
    %429 = vmatprep.subr.mxu0 0.0
    %430 = vmatpush2.msra.mxu0 0.0
    %431 = vmatprep.subr.mxu0 0.0
    %432 = vmatpush2.msra.mxu0 0.0
    %433 = vmatprep.subr.mxu0 0.0
    %434 = vmatpush2.msra.mxu0 0.0
    %435 = vmatprep.subr.mxu0 0.0
    %436 = vmatpush2.msra.mxu0 0.0
    %437 = vmatprep.subr.mxu0 0.0
    %438 = vmatpush2.msra.mxu0 0.0
    %439 = vmatprep.mubr.f32.mxu0 0.0
    %440 = vmatmul.mubr.f32.gmra.mxu0 %v373
    %v441 = vpop.f32.mrf.mxu0
    %v442 = vadd.f32 0.0, %v441
    %v443 = vpop.f32.mrf.mxu0
    %444 = vmatprep.mubr.f32.mxu0 0.0
    %445 = vmatmul.mubr.f32.gmra.mxu0 %v374
    %v446 = vpop.f32.mrf.mxu0
    %v447 = vadd.f32 0.0, %v446
    %v448 = vpop.f32.mrf.mxu0
    %449 = vdwg.mxu0
    %v450 = vrot.slane %v231, 7
    %v451 = vrot.slane %v237, 7
    %vm452 = vcmp.lt.s32.totalorder %v347, 1
    %v453 = vsel %vm452, %v450, %v451
    %v454 = vsel %vm452, %v451, %v450
    %v455 = vmul.f32 %v229, %v454
    %v456 = vmul.f32 %v235, %v453
    %457 = vmatprep.subr.mxu0 0.0
    %458 = vmatpush1.msra.mxu0 %v329
    %459 = vmatprep.subr.mxu0 0.0
    %460 = vmatpush1.msra.mxu0 %v328
    %461 = vmatprep.subr.mxu0 0.0
    %462 = vmatpush1.msra.mxu0 %v327
    %463 = vmatprep.subr.mxu0 0.0
    %464 = vmatpush1.msra.mxu0 %v326
    %465 = vmatprep.subr.mxu0 0.0
    %466 = vmatpush1.msra.mxu0 %v325
    %467 = vmatprep.subr.mxu0 0.0
    %468 = vmatpush1.msra.mxu0 %v324
    %469 = vmatprep.subr.mxu0 0.0
    %470 = vmatpush1.msra.mxu0 %v323
    %471 = vmatprep.subr.mxu0 0.0
    %472 = vmatpush1.msra.mxu0 %v322
    %473 = vmatprep.subr.mxu0 0.0
    %474 = vmatpush1.msra.mxu0 %v321
    %475 = vmatprep.subr.mxu0 0.0
    %476 = vmatpush1.msra.mxu0 %v320
    %477 = vmatprep.subr.mxu0 0.0
    %478 = vmatpush1.msra.mxu0 %v319
    %479 = vmatprep.subr.mxu0 0.0
    %480 = vmatpush1.msra.mxu0 %v318
    %481 = vmatprep.subr.mxu0 0.0
    %482 = vmatpush1.msra.mxu0 %v317
    %483 = vmatprep.subr.mxu0 0.0
    %484 = vmatpush1.msra.mxu0 %v316
    %485 = vmatprep.subr.mxu0 0.0
    %486 = vmatpush1.msra.mxu0 %v315
    %487 = vmatprep.subr.mxu0 0.0
    %488 = vmatpush1.msra.mxu0 %v314
    %489 = vmatprep.subr.mxu0 0.0
    %490 = vmatpush2.msra.mxu0 0.0
    %491 = vmatprep.subr.mxu0 0.0
    %492 = vmatpush2.msra.mxu0 0.0
    %493 = vmatprep.subr.mxu0 0.0
    %494 = vmatpush2.msra.mxu0 0.0
    %495 = vmatprep.subr.mxu0 0.0
    %496 = vmatpush2.msra.mxu0 0.0
    %497 = vmatprep.subr.mxu0 0.0
    %498 = vmatpush2.msra.mxu0 0.0
    %499 = vmatprep.subr.mxu0 0.0
    %500 = vmatpush2.msra.mxu0 0.0
    %501 = vmatprep.subr.mxu0 0.0
    %502 = vmatpush2.msra.mxu0 0.0
    %503 = vmatprep.subr.mxu0 0.0
    %504 = vmatpush2.msra.mxu0 0.0
    %505 = vmatprep.subr.mxu0 0.0
    %506 = vmatpush2.msra.mxu0 0.0
    %507 = vmatprep.subr.mxu0 0.0
    %508 = vmatpush2.msra.mxu0 0.0
    %509 = vmatprep.subr.mxu0 0.0
    %510 = vmatpush2.msra.mxu0 0.0
    %511 = vmatprep.subr.mxu0 0.0
    %512 = vmatpush2.msra.mxu0 0.0
    %513 = vmatprep.subr.mxu0 0.0
    %514 = vmatpush2.msra.mxu0 0.0
    %515 = vmatprep.subr.mxu0 0.0
    %516 = vmatpush2.msra.mxu0 0.0
    %517 = vmatprep.subr.mxu0 0.0
    %518 = vmatpush2.msra.mxu0 0.0
    %519 = vmatprep.subr.mxu0 0.0
    %520 = vmatpush2.msra.mxu0 0.0
    %521 = vmatprep.mubr.f32.mxu0 0.0
    %522 = vmatmul.mubr.f32.gmra.mxu0 %v455
    %v523 = vpop.f32.mrf.mxu0
    %v524 = vadd.f32 0.0, %v523
    %v525 = vpop.f32.mrf.mxu0
    %526 = vmatprep.mubr.f32.mxu0 0.0
    %527 = vmatmul.mubr.f32.gmra.mxu0 %v456
    %v528 = vpop.f32.mrf.mxu0
    %v529 = vadd.f32 0.0, %v528
    %v530 = vpop.f32.mrf.mxu0
    %531 = vdwg.mxu0
    %vm532 = vcmp.ge.s32.totalorder %v371, 1
    %vm533 = vcmp.ge.s32.totalorder %v372, 1
    %v534 = vsel %vm532, %v524, -1e+30
    %v535 = vsel %vm533, %v529, -1e+30
    %v536 = vrot.slane %v306, 7
    %v537 = vrot.slane %v311, 7
    %v538 = vsel %vm452, %v536, %v537
    %v539 = vsel %vm452, %v537, %v536
    %v540 = vrot.slane %v231, 6
    %v541 = vrot.slane %v237, 6
    %vm542 = vcmp.lt.s32.totalorder %v347, 2
    %v543 = vsel %vm542, %v540, %v541
    %v544 = vsel %vm542, %v541, %v540
    %v545 = vmul.f32 %v229, %v544
    %v546 = vmul.f32 %v235, %v543
    %547 = vmatprep.subr.mxu0 0.0
    %548 = vmatpush1.msra.mxu0 %v329
    %549 = vmatprep.subr.mxu0 0.0
    %550 = vmatpush1.msra.mxu0 %v328
    %551 = vmatprep.subr.mxu0 0.0
    %552 = vmatpush1.msra.mxu0 %v327
    %553 = vmatprep.subr.mxu0 0.0
    %554 = vmatpush1.msra.mxu0 %v326
    %555 = vmatprep.subr.mxu0 0.0
    %556 = vmatpush1.msra.mxu0 %v325
    %557 = vmatprep.subr.mxu0 0.0
    %558 = vmatpush1.msra.mxu0 %v324
    %559 = vmatprep.subr.mxu0 0.0
    %560 = vmatpush1.msra.mxu0 %v323
    %561 = vmatprep.subr.mxu0 0.0
    %562 = vmatpush1.msra.mxu0 %v322
    %563 = vmatprep.subr.mxu0 0.0
    %564 = vmatpush1.msra.mxu0 %v321
    %565 = vmatprep.subr.mxu0 0.0
    %566 = vmatpush1.msra.mxu0 %v320
    %567 = vmatprep.subr.mxu0 0.0
    %568 = vmatpush1.msra.mxu0 %v319
    %569 = vmatprep.subr.mxu0 0.0
    %570 = vmatpush1.msra.mxu0 %v318
    %571 = vmatprep.subr.mxu0 0.0
    %572 = vmatpush1.msra.mxu0 %v317
    %573 = vmatprep.subr.mxu0 0.0
    %574 = vmatpush1.msra.mxu0 %v316
    %575 = vmatprep.subr.mxu0 0.0
    %576 = vmatpush1.msra.mxu0 %v315
    %577 = vmatprep.subr.mxu0 0.0
    %578 = vmatpush1.msra.mxu0 %v314
    %579 = vmatprep.subr.mxu0 0.0
    %580 = vmatpush2.msra.mxu0 0.0
    %581 = vmatprep.subr.mxu0 0.0
    %582 = vmatpush2.msra.mxu0 0.0
    %583 = vmatprep.subr.mxu0 0.0
    %584 = vmatpush2.msra.mxu0 0.0
    %585 = vmatprep.subr.mxu0 0.0
    %586 = vmatpush2.msra.mxu0 0.0
    %587 = vmatprep.subr.mxu0 0.0
    %588 = vmatpush2.msra.mxu0 0.0
    %589 = vmatprep.subr.mxu0 0.0
    %590 = vmatpush2.msra.mxu0 0.0
    %591 = vmatprep.subr.mxu0 0.0
    %592 = vmatpush2.msra.mxu0 0.0
    %593 = vmatprep.subr.mxu0 0.0
    %594 = vmatpush2.msra.mxu0 0.0
    %595 = vmatprep.subr.mxu0 0.0
    %596 = vmatpush2.msra.mxu0 0.0
    %597 = vmatprep.subr.mxu0 0.0
    %598 = vmatpush2.msra.mxu0 0.0
    %599 = vmatprep.subr.mxu0 0.0
    %600 = vmatpush2.msra.mxu0 0.0
    %601 = vmatprep.subr.mxu0 0.0
    %602 = vmatpush2.msra.mxu0 0.0
    %603 = vmatprep.subr.mxu0 0.0
    %604 = vmatpush2.msra.mxu0 0.0
    %605 = vmatprep.subr.mxu0 0.0
    %606 = vmatpush2.msra.mxu0 0.0
    %607 = vmatprep.subr.mxu0 0.0
    %608 = vmatpush2.msra.mxu0 0.0
    %609 = vmatprep.subr.mxu0 0.0
    %610 = vmatpush2.msra.mxu0 0.0
    %611 = vmatprep.mubr.f32.mxu0 0.0
    %612 = vmatmul.mubr.f32.gmra.mxu0 %v545
    %v613 = vpop.f32.mrf.mxu0
    %v614 = vadd.f32 0.0, %v613
    %v615 = vpop.f32.mrf.mxu0
    %616 = vmatprep.mubr.f32.mxu0 0.0
    %617 = vmatmul.mubr.f32.gmra.mxu0 %v546
    %v618 = vpop.f32.mrf.mxu0
    %v619 = vadd.f32 0.0, %v618
    %v620 = vpop.f32.mrf.mxu0
    %621 = vdwg.mxu0
    %vm622 = vcmp.ge.s32.totalorder %v371, 2
    %vm623 = vcmp.ge.s32.totalorder %v372, 2
    %v624 = vsel %vm622, %v614, -1e+30
    %v625 = vsel %vm623, %v619, -1e+30
    %v626 = vrot.slane %v306, 6
    %v627 = vrot.slane %v311, 6
    %v628 = vsel %vm542, %v626, %v627
    %v629 = vsel %vm542, %v627, %v626
    %v630 = vmax.f32 %v442, %v534
    %v631 = vmax.f32 %v447, %v535
    %v632 = vmax.f32 %v630, %v624
    %v633 = vmax.f32 %v631, %v625
    %v634 = vsub.f32 %v442, %v632
    %v635 = vsub.f32 %v447, %v633
    %v636 = vmul.f32 %v634, 1.442695
    %v637 = vpow.pop %v636
    %v638 = vmul.f32 %v635, 1.442695
    %v639 = vpow.pop %v638
    %v640 = vsub.f32 %v534, %v632
    %v641 = vsub.f32 %v535, %v633
    %v642 = vmul.f32 %v640, 1.442695
    %v643 = vpow.pop %v642
    %v644 = vmul.f32 %v641, 1.442695
    %v645 = vpow.pop %v644
    %v646 = vsub.f32 %v624, %v632
    %v647 = vsub.f32 %v625, %v633
    %v648 = vmul.f32 %v646, 1.442695
    %v649 = vpow.pop %v648
    %v650 = vmul.f32 %v647, 1.442695
    %v651 = vpow.pop %v650
    %v652 = vadd.f32 %v637, %v643
    %v653 = vadd.f32 %v639, %v645
    %v654 = vadd.f32 %v652, %v649
    %v655 = vadd.f32 %v653, %v651
    %v656 = vrcp.pop %v654
    %v657 = vrcp.pop %v655
    %v658 = vmul.f32 %v637, %v656
    %v659 = vmul.f32 %v639, %v657
    %660 = vmatprep.subr.mxu0 0.0
    %661 = vmatpush1.msra.mxu0 %v345
    %662 = vmatprep.subr.mxu0 0.0
    %663 = vmatpush1.msra.mxu0 %v344
    %664 = vmatprep.subr.mxu0 0.0
    %665 = vmatpush1.msra.mxu0 %v343
    %666 = vmatprep.subr.mxu0 0.0
    %667 = vmatpush1.msra.mxu0 %v342
    %668 = vmatprep.subr.mxu0 0.0
    %669 = vmatpush1.msra.mxu0 %v341
    %670 = vmatprep.subr.mxu0 0.0
    %671 = vmatpush1.msra.mxu0 %v340
    %672 = vmatprep.subr.mxu0 0.0
    %673 = vmatpush1.msra.mxu0 %v339
    %674 = vmatprep.subr.mxu0 0.0
    %675 = vmatpush1.msra.mxu0 %v338
    %676 = vmatprep.subr.mxu0 0.0
    %677 = vmatpush1.msra.mxu0 %v337
    %678 = vmatprep.subr.mxu0 0.0
    %679 = vmatpush1.msra.mxu0 %v336
    %680 = vmatprep.subr.mxu0 0.0
    %681 = vmatpush1.msra.mxu0 %v335
    %682 = vmatprep.subr.mxu0 0.0
    %683 = vmatpush1.msra.mxu0 %v334
    %684 = vmatprep.subr.mxu0 0.0
    %685 = vmatpush1.msra.mxu0 %v333
    %686 = vmatprep.subr.mxu0 0.0
    %687 = vmatpush1.msra.mxu0 %v332
    %688 = vmatprep.subr.mxu0 0.0
    %689 = vmatpush1.msra.mxu0 %v331
    %690 = vmatprep.subr.mxu0 0.0
    %691 = vmatpush1.msra.mxu0 %v330
    %692 = vmatprep.subr.mxu0 0.0
    %693 = vmatpush2.msra.mxu0 0.0
    %694 = vmatprep.subr.mxu0 0.0
    %695 = vmatpush2.msra.mxu0 0.0
    %696 = vmatprep.subr.mxu0 0.0
    %697 = vmatpush2.msra.mxu0 0.0
    %698 = vmatprep.subr.mxu0 0.0
    %699 = vmatpush2.msra.mxu0 0.0
    %700 = vmatprep.subr.mxu0 0.0
    %701 = vmatpush2.msra.mxu0 0.0
    %702 = vmatprep.subr.mxu0 0.0
    %703 = vmatpush2.msra.mxu0 0.0
    %704 = vmatprep.subr.mxu0 0.0
    %705 = vmatpush2.msra.mxu0 0.0
    %706 = vmatprep.subr.mxu0 0.0
    %707 = vmatpush2.msra.mxu0 0.0
    %708 = vmatprep.subr.mxu0 0.0
    %709 = vmatpush2.msra.mxu0 0.0
    %710 = vmatprep.subr.mxu0 0.0
    %711 = vmatpush2.msra.mxu0 0.0
    %712 = vmatprep.subr.mxu0 0.0
    %713 = vmatpush2.msra.mxu0 0.0
    %714 = vmatprep.subr.mxu0 0.0
    %715 = vmatpush2.msra.mxu0 0.0
    %716 = vmatprep.subr.mxu0 0.0
    %717 = vmatpush2.msra.mxu0 0.0
    %718 = vmatprep.subr.mxu0 0.0
    %719 = vmatpush2.msra.mxu0 0.0
    %720 = vmatprep.subr.mxu0 0.0
    %721 = vmatpush2.msra.mxu0 0.0
    %722 = vmatprep.subr.mxu0 0.0
    %723 = vmatpush2.msra.mxu0 0.0
    %724 = vmatprep.mubr.f32.mxu0 0.0
    %725 = vmatmul.mubr.f32.gmra.mxu0 %v658
    %v726 = vpop.f32.mrf.mxu0
    %v727 = vadd.f32 0.0, %v726
    %v728 = vpop.f32.mrf.mxu0
    %729 = vmatprep.mubr.f32.mxu0 0.0
    %730 = vmatmul.mubr.f32.gmra.mxu0 %v659
    %v731 = vpop.f32.mrf.mxu0
    %v732 = vadd.f32 0.0, %v731
    %v733 = vpop.f32.mrf.mxu0
    %734 = vdwg.mxu0
    %v735 = vmul.f32 %v727, %v306
    %v736 = vmul.f32 %v732, %v311
    %v737 = vadd.f32 %v735, 0.0
    %v738 = vadd.f32 %v736, 0.0
    %v739 = vmul.f32 %v643, %v656
    %v740 = vmul.f32 %v645, %v657
    %741 = vmatprep.subr.mxu0 0.0
    %742 = vmatpush1.msra.mxu0 %v345
    %743 = vmatprep.subr.mxu0 0.0
    %744 = vmatpush1.msra.mxu0 %v344
    %745 = vmatprep.subr.mxu0 0.0
    %746 = vmatpush1.msra.mxu0 %v343
    %747 = vmatprep.subr.mxu0 0.0
    %748 = vmatpush1.msra.mxu0 %v342
    %749 = vmatprep.subr.mxu0 0.0
    %750 = vmatpush1.msra.mxu0 %v341
    %751 = vmatprep.subr.mxu0 0.0
    %752 = vmatpush1.msra.mxu0 %v340
    %753 = vmatprep.subr.mxu0 0.0
    %754 = vmatpush1.msra.mxu0 %v339
    %755 = vmatprep.subr.mxu0 0.0
    %756 = vmatpush1.msra.mxu0 %v338
    %757 = vmatprep.subr.mxu0 0.0
    %758 = vmatpush1.msra.mxu0 %v337
    %759 = vmatprep.subr.mxu0 0.0
    %760 = vmatpush1.msra.mxu0 %v336
    %761 = vmatprep.subr.mxu0 0.0
    %762 = vmatpush1.msra.mxu0 %v335
    %763 = vmatprep.subr.mxu0 0.0
    %764 = vmatpush1.msra.mxu0 %v334
    %765 = vmatprep.subr.mxu0 0.0
    %766 = vmatpush1.msra.mxu0 %v333
    %767 = vmatprep.subr.mxu0 0.0
    %768 = vmatpush1.msra.mxu0 %v332
    %769 = vmatprep.subr.mxu0 0.0
    %770 = vmatpush1.msra.mxu0 %v331
    %771 = vmatprep.subr.mxu0 0.0
    %772 = vmatpush1.msra.mxu0 %v330
    %773 = vmatprep.subr.mxu0 0.0
    %774 = vmatpush2.msra.mxu0 0.0
    %775 = vmatprep.subr.mxu0 0.0
    %776 = vmatpush2.msra.mxu0 0.0
    %777 = vmatprep.subr.mxu0 0.0
    %778 = vmatpush2.msra.mxu0 0.0
    %779 = vmatprep.subr.mxu0 0.0
    %780 = vmatpush2.msra.mxu0 0.0
    %781 = vmatprep.subr.mxu0 0.0
    %782 = vmatpush2.msra.mxu0 0.0
    %783 = vmatprep.subr.mxu0 0.0
    %784 = vmatpush2.msra.mxu0 0.0
    %785 = vmatprep.subr.mxu0 0.0
    %786 = vmatpush2.msra.mxu0 0.0
    %787 = vmatprep.subr.mxu0 0.0
    %788 = vmatpush2.msra.mxu0 0.0
    %789 = vmatprep.subr.mxu0 0.0
    %790 = vmatpush2.msra.mxu0 0.0
    %791 = vmatprep.subr.mxu0 0.0
    %792 = vmatpush2.msra.mxu0 0.0
    %793 = vmatprep.subr.mxu0 0.0
    %794 = vmatpush2.msra.mxu0 0.0
    %795 = vmatprep.subr.mxu0 0.0
    %796 = vmatpush2.msra.mxu0 0.0
    %797 = vmatprep.subr.mxu0 0.0
    %798 = vmatpush2.msra.mxu0 0.0
    %799 = vmatprep.subr.mxu0 0.0
    %800 = vmatpush2.msra.mxu0 0.0
    %801 = vmatprep.subr.mxu0 0.0
    %802 = vmatpush2.msra.mxu0 0.0
    %803 = vmatprep.subr.mxu0 0.0
    %804 = vmatpush2.msra.mxu0 0.0
    %805 = vmatprep.mubr.f32.mxu0 0.0
    %806 = vmatmul.mubr.f32.gmra.mxu0 %v739
    %v807 = vpop.f32.mrf.mxu0
    %v808 = vadd.f32 0.0, %v807
    %v809 = vpop.f32.mrf.mxu0
    %810 = vmatprep.mubr.f32.mxu0 0.0
    %811 = vmatmul.mubr.f32.gmra.mxu0 %v740
    %v812 = vpop.f32.mrf.mxu0
    %v813 = vadd.f32 0.0, %v812
    %v814 = vpop.f32.mrf.mxu0
    %815 = vdwg.mxu0
    %v816 = vmul.f32 %v808, %v539
    %v817 = vmul.f32 %v813, %v538
    %v818 = vadd.f32 %v737, %v816
    %v819 = vadd.f32 %v738, %v817
    %v820 = vmul.f32 %v649, %v656
    %v821 = vmul.f32 %v651, %v657
    %822 = vmatprep.subr.mxu0 0.0
    %823 = vmatpush1.msra.mxu0 %v345
    %824 = vmatprep.subr.mxu0 0.0
    %825 = vmatpush1.msra.mxu0 %v344
    %826 = vmatprep.subr.mxu0 0.0
    %827 = vmatpush1.msra.mxu0 %v343
    %828 = vmatprep.subr.mxu0 0.0
    %829 = vmatpush1.msra.mxu0 %v342
    %830 = vmatprep.subr.mxu0 0.0
    %831 = vmatpush1.msra.mxu0 %v341
    %832 = vmatprep.subr.mxu0 0.0
    %833 = vmatpush1.msra.mxu0 %v340
    %834 = vmatprep.subr.mxu0 0.0
    %835 = vmatpush1.msra.mxu0 %v339
    %836 = vmatprep.subr.mxu0 0.0
    %837 = vmatpush1.msra.mxu0 %v338
    %838 = vmatprep.subr.mxu0 0.0
    %839 = vmatpush1.msra.mxu0 %v337
    %840 = vmatprep.subr.mxu0 0.0
    %841 = vmatpush1.msra.mxu0 %v336
    %842 = vmatprep.subr.mxu0 0.0
    %843 = vmatpush1.msra.mxu0 %v335
    %844 = vmatprep.subr.mxu0 0.0
    %845 = vmatpush1.msra.mxu0 %v334
    %846 = vmatprep.subr.mxu0 0.0
    %847 = vmatpush1.msra.mxu0 %v333
    %848 = vmatprep.subr.mxu0 0.0
    %849 = vmatpush1.msra.mxu0 %v332
    %850 = vmatprep.subr.mxu0 0.0
    %851 = vmatpush1.msra.mxu0 %v331
    %852 = vmatprep.subr.mxu0 0.0
    %853 = vmatpush1.msra.mxu0 %v330
    %854 = vmatprep.subr.mxu0 0.0
    %855 = vmatpush2.msra.mxu0 0.0
    %856 = vmatprep.subr.mxu0 0.0
    %857 = vmatpush2.msra.mxu0 0.0
    %858 = vmatprep.subr.mxu0 0.0
    %859 = vmatpush2.msra.mxu0 0.0
    %860 = vmatprep.subr.mxu0 0.0
    %861 = vmatpush2.msra.mxu0 0.0
    %862 = vmatprep.subr.mxu0 0.0
    %863 = vmatpush2.msra.mxu0 0.0
    %864 = vmatprep.subr.mxu0 0.0
    %865 = vmatpush2.msra.mxu0 0.0
    %866 = vmatprep.subr.mxu0 0.0
    %867 = vmatpush2.msra.mxu0 0.0
    %868 = vmatprep.subr.mxu0 0.0
    %869 = vmatpush2.msra.mxu0 0.0
    %870 = vmatprep.subr.mxu0 0.0
    %871 = vmatpush2.msra.mxu0 0.0
    %872 = vmatprep.subr.mxu0 0.0
    %873 = vmatpush2.msra.mxu0 0.0
    %874 = vmatprep.subr.mxu0 0.0
    %875 = vmatpush2.msra.mxu0 0.0
    %876 = vmatprep.subr.mxu0 0.0
    %877 = vmatpush2.msra.mxu0 0.0
    %878 = vmatprep.subr.mxu0 0.0
    %879 = vmatpush2.msra.mxu0 0.0
    %880 = vmatprep.subr.mxu0 0.0
    %881 = vmatpush2.msra.mxu0 0.0
    %882 = vmatprep.subr.mxu0 0.0
    %883 = vmatpush2.msra.mxu0 0.0
    %884 = vmatprep.subr.mxu0 0.0
    %885 = vmatpush2.msra.mxu0 0.0
    %886 = vmatprep.mubr.f32.mxu0 0.0
    %887 = vmatmul.mubr.f32.gmra.mxu0 %v820
    %v888 = vpop.f32.mrf.mxu0
    %v889 = vadd.f32 0.0, %v888
    %v890 = vpop.f32.mrf.mxu0
    %891 = vmatprep.mubr.f32.mxu0 0.0
    %892 = vmatmul.mubr.f32.gmra.mxu0 %v821
    %v893 = vpop.f32.mrf.mxu0
    %v894 = vadd.f32 0.0, %v893
    %v895 = vpop.f32.mrf.mxu0
    %896 = vdwg.mxu0
    %v897 = vmul.f32 %v889, %v629
    %v898 = vmul.f32 %v894, %v628
    %v899 = vadd.f32 %v818, %v897
    %v900 = vadd.f32 %v819, %v898
    %v901 = vld [vmem:[#allocation7] sm:$0xff]
    %v902 = vld [vmem:[#allocation7 + $0x8] sm:$0xff]
    %v903 = vld [vmem:[#allocation7 + $0x10] sm:$0xff]
    %v904 = vld [vmem:[#allocation7 + $0x18] sm:$0xff]
    %v905 = vld [vmem:[#allocation7 + $0x20] sm:$0xff]
    %v906 = vld [vmem:[#allocation7 + $0x28] sm:$0xff]
    %v907 = vld [vmem:[#allocation7 + $0x30] sm:$0xff]
    %v908 = vld [vmem:[#allocation7 + $0x38] sm:$0xff]
    %v909 = vld [vmem:[#allocation7 + $0x40] sm:$0xff]
    %v910 = vld [vmem:[#allocation7 + $0x48] sm:$0xff]
    %v911 = vld [vmem:[#allocation7 + $0x50] sm:$0xff]
    %v912 = vld [vmem:[#allocation7 + $0x58] sm:$0xff]
    %v913 = vld [vmem:[#allocation7 + $0x60] sm:$0xff]
    %v914 = vld [vmem:[#allocation7 + $0x68] sm:$0xff]
    %v915 = vld [vmem:[#allocation7 + $0x70] sm:$0xff]
    %v916 = vld [vmem:[#allocation7 + $0x78] sm:$0xff]
    %v917 = vld [vmem:[%s4] sm:$0x1]
    %v919 = vlaneseq
    %v920 = vshrl.u32 %v919, 7
    %v921 = vsub.s32 0, %v920
    %v922 = vrot.slane %v917, %v921
    %924 = vmatprep.subr.mxu0 0.0
    %925 = vmatpush1.msra.mxu0 %v916
    %926 = vmatprep.subr.mxu0 0.0
    %927 = vmatpush1.msra.mxu0 %v915
    %928 = vmatprep.subr.mxu0 0.0
    %929 = vmatpush1.msra.mxu0 %v914
    %930 = vmatprep.subr.mxu0 0.0
    %931 = vmatpush1.msra.mxu0 %v913
    %932 = vmatprep.subr.mxu0 0.0
    %933 = vmatpush1.msra.mxu0 %v912
    %934 = vmatprep.subr.mxu0 0.0
    %935 = vmatpush1.msra.mxu0 %v911
    %936 = vmatprep.subr.mxu0 0.0
    %937 = vmatpush1.msra.mxu0 %v910
    %938 = vmatprep.subr.mxu0 0.0
    %939 = vmatpush1.msra.mxu0 %v909
    %940 = vmatprep.subr.mxu0 0.0
    %941 = vmatpush1.msra.mxu0 %v908
    %942 = vmatprep.subr.mxu0 0.0
    %943 = vmatpush1.msra.mxu0 %v907
    %944 = vmatprep.subr.mxu0 0.0
    %945 = vmatpush1.msra.mxu0 %v906
    %946 = vmatprep.subr.mxu0 0.0
    %947 = vmatpush1.msra.mxu0 %v905
    %948 = vmatprep.subr.mxu0 0.0
    %949 = vmatpush1.msra.mxu0 %v904
    %950 = vmatprep.subr.mxu0 0.0
    %951 = vmatpush1.msra.mxu0 %v903
    %952 = vmatprep.subr.mxu0 0.0
    %953 = vmatpush1.msra.mxu0 %v902
    %954 = vmatprep.subr.mxu0 0.0
    %955 = vmatpush1.msra.mxu0 %v901
    %956 = vmatprep.subr.mxu0 0.0
    %957 = vmatpush2.msra.mxu0 0.0
    %958 = vmatprep.subr.mxu0 0.0
    %959 = vmatpush2.msra.mxu0 0.0
    %960 = vmatprep.subr.mxu0 0.0
    %961 = vmatpush2.msra.mxu0 0.0
    %962 = vmatprep.subr.mxu0 0.0
    %963 = vmatpush2.msra.mxu0 0.0
    %964 = vmatprep.subr.mxu0 0.0
    %965 = vmatpush2.msra.mxu0 0.0
    %966 = vmatprep.subr.mxu0 0.0
    %967 = vmatpush2.msra.mxu0 0.0
    %968 = vmatprep.subr.mxu0 0.0
    %969 = vmatpush2.msra.mxu0 0.0
    %970 = vmatprep.subr.mxu0 0.0
    %971 = vmatpush2.msra.mxu0 0.0
    %972 = vmatprep.subr.mxu0 0.0
    %973 = vmatpush2.msra.mxu0 0.0
    %974 = vmatprep.subr.mxu0 0.0
    %975 = vmatpush2.msra.mxu0 0.0
    %976 = vmatprep.subr.mxu0 0.0
    %977 = vmatpush2.msra.mxu0 0.0
    %978 = vmatprep.subr.mxu0 0.0
    %979 = vmatpush2.msra.mxu0 0.0
    %980 = vmatprep.subr.mxu0 0.0
    %981 = vmatpush2.msra.mxu0 0.0
    %982 = vmatprep.subr.mxu0 0.0
    %983 = vmatpush2.msra.mxu0 0.0
    %984 = vmatprep.subr.mxu0 0.0
    %985 = vmatpush2.msra.mxu0 0.0
    %986 = vmatprep.subr.mxu0 0.0
    %987 = vmatpush2.msra.mxu0 0.0
    %988 = vmatprep.mubr.f32.mxu0 0.0
    %989 = vmatmul.mubr.f32.gmra.mxu0 %v899
    %v990 = vpop.f32.mrf.mxu0
    %v991 = vadd.f32 %v922, %v990
    %v992 = vpop.f32.mrf.mxu0
    %993 = vmatprep.mubr.f32.mxu0 0.0
    %994 = vmatmul.mubr.f32.gmra.mxu0 %v900
    %v995 = vpop.f32.mrf.mxu0
    %v996 = vadd.f32 %v922, %v995
    %v997 = vpop.f32.mrf.mxu0
    %998 = vdwg.mxu0
    %999 = vst [vmem:[#allocation11] sm:$0xff] %v991
    %1000 = vst [vmem:[#allocation11 + $0x8] sm:$0xff] %v996
    // Predicated region
    $region50: #{tpu_custom_call.1} parent=1 // pred_check
      _
    $region51: #{tpu_custom_call.1} parent=1 // pred_check_branch
      %1002 = sbr.rel (0) target = $region53
    $region52: #{tpu_custom_call.1} parent=1 // pred_region
      %s1004 = ssub.s32 256, 256
      %1005 = vsyncadd [#allocation4], %s1004
      %s1006 = sshll.u32 [#allocation11], 4
      %s1007 = int_to_ptr.vmem [resolvable:$true] %s1006
      %1012 = dma.vmem_to_hbm [thread:$0]  %s1007, 256, %s7, [#allocation4], 128, 128, 8
    $region53: #{tpu_custom_call.1} parent=1 // pred_fallthru
      _
    // Predicated region
    $region54: #{tpu_custom_call.1} parent=1 // pred_check
      _
    $region55: #{tpu_custom_call.1} parent=1 // pred_check_branch
      %1014 = sbr.rel (0) target = $region57
    $region56: #{tpu_custom_call.1} parent=1 // pred_region
      %1015 = dma.done [#allocation4], 256
    $region57: #{tpu_custom_call.1} parent=1 // pred_fallthru
      _
    %1016 = vsyncpa [#allocation3], 1
    %1017 = vsyncpa [#allocation6], 1
    %1018 = vsyncpa [#allocation9], 1
    %1019 = vsyncpa [#allocation4], 1

// kernel: tpu_custom_call.1
$region0: #{tpu_custom_call.1}
  #allocation0 [shape = 'u32[]', space=smem, size = 0x4, offset = 0x4, fixed_abs, tag = 'smem constant byte address 0x4 - core index']
  #allocation1 [shape = 'u32[144,128]{1,0:T(1,128)}', space=vmem, size = 0x12000, scoped, tag = 'internal scratch']
  %s0 = inlined_call_operand.hbm [shape: f32[16,128], index: 0, kind: input, shape index: {}]
  %s1 = inlined_call_operand.hbm [shape: f32[128,384], index: 1, kind: input, shape index: {}]
  %s2 = inlined_call_operand.vmem [shape: f32[1,384], index: 2, kind: input, shape index: {}]
  %s3 = inlined_call_operand.hbm [shape: f32[128,128], index: 3, kind: input, shape index: {}]
  %s4 = inlined_call_operand.vmem [shape: f32[1,128], index: 4, kind: input, shape index: {}]
  %s5 = inlined_call_operand.hbm [shape: f32[128,128], index: 5, kind: input, shape index: {}]
  %s6 = inlined_call_operand.hbm [shape: f32[128,128], index: 6, kind: input, shape index: {}]
  %s7 = inlined_call_operand.hbm [shape: f32[16,128], index: 7, kind: output, shape index: {}]
  %s8 = sld [smem:[#allocation0]]
  $region58: #{tpu_custom_call.1} parent=0
    _
  %s10 = ssub.s32 1, %s8
  %s11 = scalar_select 0, %s10, %s8
  $region1: #{tpu_custom_call.1} parent=0
    #allocation2 [shape = 'u8[8192]{0}', space=vmem, size = 0x2000, scoped, tag = 'input window, operand 0, single buffered']
    #allocation3 [shape = 's32[1]{0}', space=sflag, size = 0x4, scoped, tag = 'scoped memory for tpu_custom_call.1']
    #allocation4 [shape = 's32[1]{0}', space=sflag, size = 0x4, scoped, tag = 'scoped memory for tpu_custom_call.1']
    #allocation5 [shape = 'u8[196608]{0}', space=vmem, size = 0x30000, scoped, tag = 'input window, operand 1, single buffered']
    #allocation6 [shape = 's32[1]{0}', space=sflag, size = 0x4, scoped, tag = 'scoped memory for tpu_custom_call.1']
    #allocation7 [shape = 'u8[65536]{0}', space=vmem, size = 0x10000, scoped, tag = 'input window, operand 3, single buffered']
    #allocation8 [shape = 'u8[65536]{0}', space=vmem, size = 0x10000, scoped, tag = 'input window, operand 5, single buffered']
    #allocation9 [shape = 's32[1]{0}', space=sflag, size = 0x4, scoped, tag = 'scoped memory for tpu_custom_call.1']
    #allocation10 [shape = 'u8[65536]{0}', space=vmem, size = 0x10000, scoped, tag = 'input window, operand 6, single buffered']
    #allocation11 [shape = 'u8[8192]{0}', space=vmem, size = 0x2000, scoped, tag = 'output window, operand 0, single buffered']
    %12 = vsyncpa [#allocation3], 0
    %13 = vsyncpa [#allocation6], 0
    %14 = vsyncpa [#allocation9], 0
    %15 = vsyncpa [#allocation4], 0
    // Predicated region
    $region2: #{tpu_custom_call.1} parent=1 // pred_check
      _
    $region3: #{tpu_custom_call.1} parent=1 // pred_check_branch
      %17 = sbr.rel (0) target = $region5
    $region4: #{tpu_custom_call.1} parent=1 // pred_region
      %s19 = ssub.s32 256, 256
      %20 = vsyncadd [#allocation3], %s19
      %s21 = sshll.u32 [#allocation2], 4
      %s22 = int_to_ptr.vmem [resolvable:$true] %s21
      %27 = dma.hbm_to_vmem [thread:$0]  %s0, 256, %s22, [#allocation3], 128, 128, 8
    $region5: #{tpu_custom_call.1} parent=1 // pred_fallthru
      _
    // Predicated region
    $region6: #{tpu_custom_call.1} parent=1 // pred_check
      _
    $region7: #{tpu_custom_call.1} parent=1 // pred_check_branch
      %29 = sbr.rel (0) target = $region9
    $region8: #{tpu_custom_call.1} parent=1 // pred_region
      %s31 = ssub.s32 6144, 6144
      %32 = vsyncadd [#allocation6], %s31
      %s33 = sshll.u32 [#allocation5], 4
      %s34 = int_to_ptr.vmem [resolvable:$true] %s33
      %39 = dma.hbm_to_vmem [thread:$0]  %s1, 6144, %s34, [#allocation6], 384, 384, 24
    $region9: #{tpu_custom_call.1} parent=1 // pred_fallthru
      _
    // Predicated region
    $region10: #{tpu_custom_call.1} parent=1 // pred_check
      _
    $region11: #{tpu_custom_call.1} parent=1 // pred_check_branch
      %41 = sbr.rel (0) target = $region13
    $region12: #{tpu_custom_call.1} parent=1 // pred_region
      _
    $region13: #{tpu_custom_call.1} parent=1 // pred_fallthru
      _
    // Predicated region
    $region14: #{tpu_custom_call.1} parent=1 // pred_check
      _
    $region15: #{tpu_custom_call.1} parent=1 // pred_check_branch
      %43 = sbr.rel (0) target = $region17
    $region16: #{tpu_custom_call.1} parent=1 // pred_region
      %s45 = ssub.s32 2048, 2048
      %46 = vsyncadd [#allocation6], %s45
      %s47 = sshll.u32 [#allocation7], 4
      %s48 = int_to_ptr.vmem [resolvable:$true] %s47
      %53 = dma.hbm_to_vmem [thread:$0]  %s3, 2048, %s48, [#allocation6], 128, 128, 8
    $region17: #{tpu_custom_call.1} parent=1 // pred_fallthru
      _
    // Predicated region
    $region18: #{tpu_custom_call.1} parent=1 // pred_check
      _
    $region19: #{tpu_custom_call.1} parent=1 // pred_check_branch
      %55 = sbr.rel (0) target = $region21
    $region20: #{tpu_custom_call.1} parent=1 // pred_region
      _
    $region21: #{tpu_custom_call.1} parent=1 // pred_fallthru
      _
    // Predicated region
    $region22: #{tpu_custom_call.1} parent=1 // pred_check
      _
    $region23: #{tpu_custom_call.1} parent=1 // pred_check_branch
      %57 = sbr.rel (0) target = $region25
    $region24: #{tpu_custom_call.1} parent=1 // pred_region
      %s59 = ssub.s32 2048, 2048
      %60 = vsyncadd [#allocation9], %s59
      %s61 = sshll.u32 [#allocation8], 4
      %s62 = int_to_ptr.vmem [resolvable:$true] %s61
      %67 = dma.hbm_to_vmem [thread:$0]  %s5, 2048, %s62, [#allocation9], 128, 128, 8
    $region25: #{tpu_custom_call.1} parent=1 // pred_fallthru
      _
    // Predicated region
    $region26: #{tpu_custom_call.1} parent=1 // pred_check
      _
    $region27: #{tpu_custom_call.1} parent=1 // pred_check_branch
      %69 = sbr.rel (0) target = $region29
    $region28: #{tpu_custom_call.1} parent=1 // pred_region
      %s71 = ssub.s32 2048, 2048
      %72 = vsyncadd [#allocation9], %s71
      %s73 = sshll.u32 [#allocation10], 4
      %s74 = int_to_ptr.vmem [resolvable:$true] %s73
      %79 = dma.hbm_to_vmem [thread:$0]  %s6, 2048, %s74, [#allocation9], 128, 128, 8
    $region29: #{tpu_custom_call.1} parent=1 // pred_fallthru
      _
    // Predicated region
    $region30: #{tpu_custom_call.1} parent=1 // pred_check
      _
    $region31: #{tpu_custom_call.1} parent=1 // pred_check_branch
      %81 = sbr.rel (0) target = $region33
    $region32: #{tpu_custom_call.1} parent=1 // pred_region
      %82 = dma.done [#allocation3], 256
    $region33: #{tpu_custom_call.1} parent=1 // pred_fallthru
      _
    // Predicated region
    $region34: #{tpu_custom_call.1} parent=1 // pred_check
      _
    $region35: #{tpu_custom_call.1} parent=1 // pred_check_branch
      %84 = sbr.rel (0) target = $region37
    $region36: #{tpu_custom_call.1} parent=1 // pred_region
      %85 = dma.done [#allocation6], 6144
    $region37: #{tpu_custom_call.1} parent=1 // pred_fallthru
      _
    // Predicated region
    $region38: #{tpu_custom_call.1} parent=1 // pred_check
      _
    $region39: #{tpu_custom_call.1} parent=1 // pred_check_branch
      %87 = sbr.rel (0) target = $region41
    $region40: #{tpu_custom_call.1} parent=1 // pred_region
      %88 = dma.done [#allocation6], 2048
    $region41: #{tpu_custom_call.1} parent=1 // pred_fallthru
      _
    // Predicated region
    $region42: #{tpu_custom_call.1} parent=1 // pred_check
      _
    $region43: #{tpu_custom_call.1} parent=1 // pred_check_branch
      %90 = sbr.rel (0) target = $region45
    $region44: #{tpu_custom_call.1} parent=1 // pred_region
      %91 = dma.done [#allocation9], 2048
    $region45: #{tpu_custom_call.1} parent=1 // pred_fallthru
      _
    // Predicated region
    $region46: #{tpu_custom_call.1} parent=1 // pred_check
      _
    $region47: #{tpu_custom_call.1} parent=1 // pred_check_branch
      %93 = sbr.rel (0) target = $region49
    $region48: #{tpu_custom_call.1} parent=1 // pred_region
      %94 = dma.done [#allocation9], 2048
    $region49: #{tpu_custom_call.1} parent=1 // pred_fallthru
      _
    %v95 = vld [vmem:[#allocation2] sm:$0xff]
    %v96 = vld [vmem:[#allocation2 + $0x8] sm:$0xff]
    %v97 = vld [vmem:[#allocation5] sm:$0xff]
    %v98 = vld [vmem:[#allocation5 + $0x8] sm:$0xff]
    %v99 = vld [vmem:[#allocation5 + $0x10] sm:$0xff]
    %v100 = vld [vmem:[#allocation5 + $0x18] sm:$0xff]
    %v101 = vld [vmem:[#allocation5 + $0x20] sm:$0xff]
    %v102 = vld [vmem:[#allocation5 + $0x28] sm:$0xff]
    %v103 = vld [vmem:[#allocation5 + $0x30] sm:$0xff]
    %v104 = vld [vmem:[#allocation5 + $0x38] sm:$0xff]
    %v105 = vld [vmem:[#allocation5 + $0x40] sm:$0xff]
    %v106 = vld [vmem:[#allocation5 + $0x48] sm:$0xff]
    %v107 = vld [vmem:[#allocation5 + $0x50] sm:$0xff]
    %v108 = vld [vmem:[#allocation5 + $0x58] sm:$0xff]
    %v109 = vld [vmem:[#allocation5 + $0x60] sm:$0xff]
    %v110 = vld [vmem:[#allocation5 + $0x68] sm:$0xff]
    %v111 = vld [vmem:[#allocation5 + $0x70] sm:$0xff]
    %v112 = vld [vmem:[#allocation5 + $0x78] sm:$0xff]
    %v113 = vld [vmem:[#allocation5 + $0x80] sm:$0xff]
    %v114 = vld [vmem:[#allocation5 + $0x88] sm:$0xff]
    %v115 = vld [vmem:[#allocation5 + $0x90] sm:$0xff]
    %v116 = vld [vmem:[#allocation5 + $0x98] sm:$0xff]
    %v117 = vld [vmem:[#allocation5 + $0xa0] sm:$0xff]
    %v118 = vld [vmem:[#allocation5 + $0xa8] sm:$0xff]
    %v119 = vld [vmem:[#allocation5 + $0xb0] sm:$0xff]
    %v120 = vld [vmem:[#allocation5 + $0xb8] sm:$0xff]
    %v121 = vld [vmem:[#allocation5 + $0xc0] sm:$0xff]
    %v122 = vld [vmem:[#allocation5 + $0xc8] sm:$0xff]
    %v123 = vld [vmem:[#allocation5 + $0xd0] sm:$0xff]
    %v124 = vld [vmem:[#allocation5 + $0xd8] sm:$0xff]
    %v125 = vld [vmem:[#allocation5 + $0xe0] sm:$0xff]
    %v126 = vld [vmem:[#allocation5 + $0xe8] sm:$0xff]
    %v127 = vld [vmem:[#allocation5 + $0xf0] sm:$0xff]
    %v128 = vld [vmem:[#allocation5 + $0xf8] sm:$0xff]
    %v129 = vld [vmem:[#allocation5 + $0x100] sm:$0xff]
    %v130 = vld [vmem:[#allocation5 + $0x108] sm:$0xff]
    %v131 = vld [vmem:[#allocation5 + $0x110] sm:$0xff]
    %v132 = vld [vmem:[#allocation5 + $0x118] sm:$0xff]
    %v133 = vld [vmem:[#allocation5 + $0x120] sm:$0xff]
    %v134 = vld [vmem:[#allocation5 + $0x128] sm:$0xff]
    %v135 = vld [vmem:[#allocation5 + $0x130] sm:$0xff]
    %v136 = vld [vmem:[#allocation5 + $0x138] sm:$0xff]
    %v137 = vld [vmem:[#allocation5 + $0x140] sm:$0xff]
    %v138 = vld [vmem:[#allocation5 + $0x148] sm:$0xff]
    %v139 = vld [vmem:[#allocation5 + $0x150] sm:$0xff]
    %v140 = vld [vmem:[#allocation5 + $0x158] sm:$0xff]
    %v141 = vld [vmem:[#allocation5 + $0x160] sm:$0xff]
    %v142 = vld [vmem:[#allocation5 + $0x168] sm:$0xff]
    %v143 = vld [vmem:[#allocation5 + $0x170] sm:$0xff]
    %v144 = vld [vmem:[#allocation5 + $0x178] sm:$0xff]
    %v145 = vld [vmem:[%s2] sm:$0x7]
    %v147 = vlaneseq
    %v148 = vshrl.u32 %v147, 7
    %v149 = vsub.s32 0, %v148
    %v150 = vrot.slane %v145, %v149
    %v151 = vlaneseq
    %v152 = vshrl.u32 %v151, 7
    %v153 = vsub.s32 1, %v152
    %v154 = vrot.slane %v145, %v153
    %v155 = vlaneseq
    %v156 = vshrl.u32 %v155, 7
    %v157 = vsub.s32 2, %v156
    %v158 = vrot.slane %v145, %v157
    %162 = vmatprep.subr.mxu0 %v143
    %163 = vmatpush1.msra.mxu0 %v142
    %164 = vmatprep.subr.mxu0 %v140
    %165 = vmatpush1.msra.mxu0 %v139
    %166 = vmatprep.subr.mxu0 %v137
    %167 = vmatpush1.msra.mxu0 %v136
    %168 = vmatprep.subr.mxu0 %v134
    %169 = vmatpush1.msra.mxu0 %v133
    %170 = vmatprep.subr.mxu0 %v131
    %171 = vmatpush1.msra.mxu0 %v130
    %172 = vmatprep.subr.mxu0 %v128
    %173 = vmatpush1.msra.mxu0 %v127
    %174 = vmatprep.subr.mxu0 %v125
    %175 = vmatpush1.msra.mxu0 %v124
    %176 = vmatprep.subr.mxu0 %v122
    %177 = vmatpush1.msra.mxu0 %v121
    %178 = vmatprep.subr.mxu0 %v119
    %179 = vmatpush1.msra.mxu0 %v118
    %180 = vmatprep.subr.mxu0 %v116
    %181 = vmatpush1.msra.mxu0 %v115
    %182 = vmatprep.subr.mxu0 %v113
    %183 = vmatpush1.msra.mxu0 %v112
    %184 = vmatprep.subr.mxu0 %v110
    %185 = vmatpush1.msra.mxu0 %v109
    %186 = vmatprep.subr.mxu0 %v107
    %187 = vmatpush1.msra.mxu0 %v106
    %188 = vmatprep.subr.mxu0 %v104
    %189 = vmatpush1.msra.mxu0 %v103
    %190 = vmatprep.subr.mxu0 %v101
    %191 = vmatpush1.msra.mxu0 %v100
    %192 = vmatprep.subr.mxu0 %v98
    %193 = vmatpush1.msra.mxu0 %v97
    %194 = vmatprep.subr.mxu0 0.0
    %195 = vmatpush2.msra.mxu0 0.0
    %196 = vmatprep.subr.mxu0 0.0
    %197 = vmatpush2.msra.mxu0 0.0
    %198 = vmatprep.subr.mxu0 0.0
    %199 = vmatpush2.msra.mxu0 0.0
    %200 = vmatprep.subr.mxu0 0.0
    %201 = vmatpush2.msra.mxu0 0.0
    %202 = vmatprep.subr.mxu0 0.0
    %203 = vmatpush2.msra.mxu0 0.0
    %204 = vmatprep.subr.mxu0 0.0
    %205 = vmatpush2.msra.mxu0 0.0
    %206 = vmatprep.subr.mxu0 0.0
    %207 = vmatpush2.msra.mxu0 0.0
    %208 = vmatprep.subr.mxu0 0.0
    %209 = vmatpush2.msra.mxu0 0.0
    %210 = vmatprep.subr.mxu0 0.0
    %211 = vmatpush2.msra.mxu0 0.0
    %212 = vmatprep.subr.mxu0 0.0
    %213 = vmatpush2.msra.mxu0 0.0
    %214 = vmatprep.subr.mxu0 0.0
    %215 = vmatpush2.msra.mxu0 0.0
    %216 = vmatprep.subr.mxu0 0.0
    %217 = vmatpush2.msra.mxu0 0.0
    %218 = vmatprep.subr.mxu0 0.0
    %219 = vmatpush2.msra.mxu0 0.0
    %220 = vmatprep.subr.mxu0 0.0
    %221 = vmatpush2.msra.mxu0 0.0
    %222 = vmatprep.subr.mxu0 0.0
    %223 = vmatpush2.msra.mxu0 0.0
    %224 = vmatprep.subr.mxu0 0.0
    %225 = vmatpush2.msra.mxu0 0.0
    %226 = vmatprep.mubr.f32.mxu0 0.0
    %227 = vmatmul.mubr.f32.gmra.mxu0 %v95
    %v228 = vpop.f32.mrf.mxu0
    %v229 = vadd.f32 %v150, %v228
    %v230 = vpop.f32.mrf.mxu0
    %v231 = vadd.f32 %v154, %v230
    %232 = vmatprep.mubr.f32.mxu0 0.0
    %233 = vmatmul.mubr.f32.gmra.mxu0 %v96
    %v234 = vpop.f32.mrf.mxu0
    %v235 = vadd.f32 %v150, %v234
    %v236 = vpop.f32.mrf.mxu0
    %v237 = vadd.f32 %v154, %v236
    %238 = vdwg.mxu0
    %239 = vmatprep.subr.mxu0 0.0
    %240 = vmatpush1.msra.mxu0 %v144
    %241 = vmatprep.subr.mxu0 0.0
    %242 = vmatpush1.msra.mxu0 %v141
    %243 = vmatprep.subr.mxu0 0.0
    %244 = vmatpush1.msra.mxu0 %v138
    %245 = vmatprep.subr.mxu0 0.0
    %246 = vmatpush1.msra.mxu0 %v135
    %247 = vmatprep.subr.mxu0 0.0
    %248 = vmatpush1.msra.mxu0 %v132
    %249 = vmatprep.subr.mxu0 0.0
    %250 = vmatpush1.msra.mxu0 %v129
    %251 = vmatprep.subr.mxu0 0.0
    %252 = vmatpush1.msra.mxu0 %v126
    %253 = vmatprep.subr.mxu0 0.0
    %254 = vmatpush1.msra.mxu0 %v123
    %255 = vmatprep.subr.mxu0 0.0
    %256 = vmatpush1.msra.mxu0 %v120
    %257 = vmatprep.subr.mxu0 0.0
    %258 = vmatpush1.msra.mxu0 %v117
    %259 = vmatprep.subr.mxu0 0.0
    %260 = vmatpush1.msra.mxu0 %v114
    %261 = vmatprep.subr.mxu0 0.0
    %262 = vmatpush1.msra.mxu0 %v111
    %263 = vmatprep.subr.mxu0 0.0
    %264 = vmatpush1.msra.mxu0 %v108
    %265 = vmatprep.subr.mxu0 0.0
    %266 = vmatpush1.msra.mxu0 %v105
    %267 = vmatprep.subr.mxu0 0.0
    %268 = vmatpush1.msra.mxu0 %v102
    %269 = vmatprep.subr.mxu0 0.0
    %270 = vmatpush1.msra.mxu0 %v99
    %271 = vmatprep.subr.mxu0 0.0
    %272 = vmatpush2.msra.mxu0 0.0
    %273 = vmatprep.subr.mxu0 0.0
    %274 = vmatpush2.msra.mxu0 0.0
    %275 = vmatprep.subr.mxu0 0.0
    %276 = vmatpush2.msra.mxu0 0.0
    %277 = vmatprep.subr.mxu0 0.0
    %278 = vmatpush2.msra.mxu0 0.0
    %279 = vmatprep.subr.mxu0 0.0
    %280 = vmatpush2.msra.mxu0 0.0
    %281 = vmatprep.subr.mxu0 0.0
    %282 = vmatpush2.msra.mxu0 0.0
    %283 = vmatprep.subr.mxu0 0.0
    %284 = vmatpush2.msra.mxu0 0.0
    %285 = vmatprep.subr.mxu0 0.0
    %286 = vmatpush2.msra.mxu0 0.0
    %287 = vmatprep.subr.mxu0 0.0
    %288 = vmatpush2.msra.mxu0 0.0
    %289 = vmatprep.subr.mxu0 0.0
    %290 = vmatpush2.msra.mxu0 0.0
    %291 = vmatprep.subr.mxu0 0.0
    %292 = vmatpush2.msra.mxu0 0.0
    %293 = vmatprep.subr.mxu0 0.0
    %294 = vmatpush2.msra.mxu0 0.0
    %295 = vmatprep.subr.mxu0 0.0
    %296 = vmatpush2.msra.mxu0 0.0
    %297 = vmatprep.subr.mxu0 0.0
    %298 = vmatpush2.msra.mxu0 0.0
    %299 = vmatprep.subr.mxu0 0.0
    %300 = vmatpush2.msra.mxu0 0.0
    %301 = vmatprep.subr.mxu0 0.0
    %302 = vmatpush2.msra.mxu0 0.0
    %303 = vmatprep.mubr.f32.mxu0 0.0
    %304 = vmatmul.mubr.f32.gmra.mxu0 %v95
    %v305 = vpop.f32.mrf.mxu0
    %v306 = vadd.f32 %v158, %v305
    %v307 = vpop.f32.mrf.mxu0
    %308 = vmatprep.mubr.f32.mxu0 0.0
    %309 = vmatmul.mubr.f32.gmra.mxu0 %v96
    %v310 = vpop.f32.mrf.mxu0
    %v311 = vadd.f32 %v158, %v310
    %v312 = vpop.f32.mrf.mxu0
    %313 = vdwg.mxu0
    %v314 = vld [vmem:[#allocation8] sm:$0xff]
    %v315 = vld [vmem:[#allocation8 + $0x8] sm:$0xff]
    %v316 = vld [vmem:[#allocation8 + $0x10] sm:$0xff]
    %v317 = vld [vmem:[#allocation8 + $0x18] sm:$0xff]
    %v318 = vld [vmem:[#allocation8 + $0x20] sm:$0xff]
    %v319 = vld [vmem:[#allocation8 + $0x28] sm:$0xff]
    %v320 = vld [vmem:[#allocation8 + $0x30] sm:$0xff]
    %v321 = vld [vmem:[#allocation8 + $0x38] sm:$0xff]
    %v322 = vld [vmem:[#allocation8 + $0x40] sm:$0xff]
    %v323 = vld [vmem:[#allocation8 + $0x48] sm:$0xff]
    %v324 = vld [vmem:[#allocation8 + $0x50] sm:$0xff]
    %v325 = vld [vmem:[#allocation8 + $0x58] sm:$0xff]
    %v326 = vld [vmem:[#allocation8 + $0x60] sm:$0xff]
    %v327 = vld [vmem:[#allocation8 + $0x68] sm:$0xff]
    %v328 = vld [vmem:[#allocation8 + $0x70] sm:$0xff]
    %v329 = vld [vmem:[#allocation8 + $0x78] sm:$0xff]
    %v330 = vld [vmem:[#allocation10] sm:$0xff]
    %v331 = vld [vmem:[#allocation10 + $0x8] sm:$0xff]
    %v332 = vld [vmem:[#allocation10 + $0x10] sm:$0xff]
    %v333 = vld [vmem:[#allocation10 + $0x18] sm:$0xff]
    %v334 = vld [vmem:[#allocation10 + $0x20] sm:$0xff]
    %v335 = vld [vmem:[#allocation10 + $0x28] sm:$0xff]
    %v336 = vld [vmem:[#allocation10 + $0x30] sm:$0xff]
    %v337 = vld [vmem:[#allocation10 + $0x38] sm:$0xff]
    %v338 = vld [vmem:[#allocation10 + $0x40] sm:$0xff]
    %v339 = vld [vmem:[#allocation10 + $0x48] sm:$0xff]
    %v340 = vld [vmem:[#allocation10 + $0x50] sm:$0xff]
    %v341 = vld [vmem:[#allocation10 + $0x58] sm:$0xff]
    %v342 = vld [vmem:[#allocation10 + $0x60] sm:$0xff]
    %v343 = vld [vmem:[#allocation10 + $0x68] sm:$0xff]
    %v344 = vld [vmem:[#allocation10 + $0x70] sm:$0xff]
    %v345 = vld [vmem:[#allocation10 + $0x78] sm:$0xff]
    %v346 = vlaneseq
    %v347 = vshrl.u32 %v346, 7
    %v348 = vadd.s32 %v347, 8
    %vm349 = vcmp.lt.s32.totalorder %v347, 0
    %v350 = vsub.s32 0, %v347
    %v351 = vsel %vm349, %v350, %v347
    %v352 = vshrl.u32 %v351, 3
    %v353 = vand.u32 %v351, 7
    %v354 = vsub.s32 0, %v353
    %v355 = vsel %vm349, %v354, %v353
    %vm356 = vcmp.lt.s32.totalorder %v348, 0
    %v357 = vsub.s32 0, %v348
    %v358 = vsel %vm356, %v357, %v348
    %v359 = vshrl.u32 %v358, 3
    %v360 = vand.u32 %v358, 7
    %v361 = vsub.s32 0, %v360
    %v362 = vsel %vm356, %v361, %v360
    %vm363 = vcmp.ne.s32.totalorder %v355, 0
    %vm364 = vcmp.ne.s32.totalorder %v362, 0
    %vm365 = vcmp.lt.s32.totalorder %v355, 0
    %vm366 = vcmp.lt.s32.totalorder %v362, 0
    %vm367 = vmand %vm365, %vm363
    %vm368 = vmand %vm366, %vm364
    %v369 = vadd.s32 %v355, 8
    %v370 = vadd.s32 %v362, 8
    %v371 = vsel %vm367, %v369, %v355
    %v372 = vsel %vm368, %v370, %v362
    %v373 = vmul.f32 %v229, %v231
    %v374 = vmul.f32 %v235, %v237
    %375 = vmatprep.subr.mxu0 0.0
    %376 = vmatpush1.msra.mxu0 %v329
    %377 = vmatprep.subr.mxu0 0.0
    %378 = vmatpush1.msra.mxu0 %v328
    %379 = vmatprep.subr.mxu0 0.0
    %380 = vmatpush1.msra.mxu0 %v327
    %381 = vmatprep.subr.mxu0 0.0
    %382 = vmatpush1.msra.mxu0 %v326
    %383 = vmatprep.subr.mxu0 0.0
    %384 = vmatpush1.msra.mxu0 %v325
    %385 = vmatprep.subr.mxu0 0.0
    %386 = vmatpush1.msra.mxu0 %v324
    %387 = vmatprep.subr.mxu0 0.0
    %388 = vmatpush1.msra.mxu0 %v323
    %389 = vmatprep.subr.mxu0 0.0
    %390 = vmatpush1.msra.mxu0 %v322
    %391 = vmatprep.subr.mxu0 0.0
    %392 = vmatpush1.msra.mxu0 %v321
    %393 = vmatprep.subr.mxu0 0.0
    %394 = vmatpush1.msra.mxu0 %v320
    %395 = vmatprep.subr.mxu0 0.0
    %396 = vmatpush1.msra.mxu0 %v319
    %397 = vmatprep.subr.mxu0 0.0
    %398 = vmatpush1.msra.mxu0 %v318
    %399 = vmatprep.subr.mxu0 0.0
    %400 = vmatpush1.msra.mxu0 %v317
    %401 = vmatprep.subr.mxu0 0.0
    %402 = vmatpush1.msra.mxu0 %v316
    %403 = vmatprep.subr.mxu0 0.0
    %404 = vmatpush1.msra.mxu0 %v315
    %405 = vmatprep.subr.mxu0 0.0
    %406 = vmatpush1.msra.mxu0 %v314
    %407 = vmatprep.subr.mxu0 0.0
    %408 = vmatpush2.msra.mxu0 0.0
    %409 = vmatprep.subr.mxu0 0.0
    %410 = vmatpush2.msra.mxu0 0.0
    %411 = vmatprep.subr.mxu0 0.0
    %412 = vmatpush2.msra.mxu0 0.0
    %413 = vmatprep.subr.mxu0 0.0
    %414 = vmatpush2.msra.mxu0 0.0
    %415 = vmatprep.subr.mxu0 0.0
    %416 = vmatpush2.msra.mxu0 0.0
    %417 = vmatprep.subr.mxu0 0.0
    %418 = vmatpush2.msra.mxu0 0.0
    %419 = vmatprep.subr.mxu0 0.0
    %420 = vmatpush2.msra.mxu0 0.0
    %421 = vmatprep.subr.mxu0 0.0
    %422 = vmatpush2.msra.mxu0 0.0
    %423 = vmatprep.subr.mxu0 0.0
    %424 = vmatpush2.msra.mxu0 0.0
    %425 = vmatprep.subr.mxu0 0.0
    %426 = vmatpush2.msra.mxu0 0.0
    %427 = vmatprep.subr.mxu0 0.0
    %428 = vmatpush2.msra.mxu0 0.0
    %429 = vmatprep.subr.mxu0 0.0
    %430 = vmatpush2.msra.mxu0 0.0
    %431 = vmatprep.subr.mxu0 0.0
    %432 = vmatpush2.msra.mxu0 0.0
    %433 = vmatprep.subr.mxu0 0.0
    %434 = vmatpush2.msra.mxu0 0.0
    %435 = vmatprep.subr.mxu0 0.0
    %436 = vmatpush2.msra.mxu0 0.0
    %437 = vmatprep.subr.mxu0 0.0
    %438 = vmatpush2.msra.mxu0 0.0
    %439 = vmatprep.mubr.f32.mxu0 0.0
    %440 = vmatmul.mubr.f32.gmra.mxu0 %v373
    %v441 = vpop.f32.mrf.mxu0
    %v442 = vadd.f32 0.0, %v441
    %v443 = vpop.f32.mrf.mxu0
    %444 = vmatprep.mubr.f32.mxu0 0.0
    %445 = vmatmul.mubr.f32.gmra.mxu0 %v374
    %v446 = vpop.f32.mrf.mxu0
    %v447 = vadd.f32 0.0, %v446
    %v448 = vpop.f32.mrf.mxu0
    %449 = vdwg.mxu0
    %v450 = vrot.slane %v231, 7
    %v451 = vrot.slane %v237, 7
    %vm452 = vcmp.lt.s32.totalorder %v347, 1
    %v453 = vsel %vm452, %v450, %v451
    %v454 = vsel %vm452, %v451, %v450
    %v455 = vmul.f32 %v229, %v454
    %v456 = vmul.f32 %v235, %v453
    %457 = vmatprep.subr.mxu0 0.0
    %458 = vmatpush1.msra.mxu0 %v329
    %459 = vmatprep.subr.mxu0 0.0
    %460 = vmatpush1.msra.mxu0 %v328
    %461 = vmatprep.subr.mxu0 0.0
    %462 = vmatpush1.msra.mxu0 %v327
    %463 = vmatprep.subr.mxu0 0.0
    %464 = vmatpush1.msra.mxu0 %v326
    %465 = vmatprep.subr.mxu0 0.0
    %466 = vmatpush1.msra.mxu0 %v325
    %467 = vmatprep.subr.mxu0 0.0
    %468 = vmatpush1.msra.mxu0 %v324
    %469 = vmatprep.subr.mxu0 0.0
    %470 = vmatpush1.msra.mxu0 %v323
    %471 = vmatprep.subr.mxu0 0.0
    %472 = vmatpush1.msra.mxu0 %v322
    %473 = vmatprep.subr.mxu0 0.0
    %474 = vmatpush1.msra.mxu0 %v321
    %475 = vmatprep.subr.mxu0 0.0
    %476 = vmatpush1.msra.mxu0 %v320
    %477 = vmatprep.subr.mxu0 0.0
    %478 = vmatpush1.msra.mxu0 %v319
    %479 = vmatprep.subr.mxu0 0.0
    %480 = vmatpush1.msra.mxu0 %v318
    %481 = vmatprep.subr.mxu0 0.0
    %482 = vmatpush1.msra.mxu0 %v317
    %483 = vmatprep.subr.mxu0 0.0
    %484 = vmatpush1.msra.mxu0 %v316
    %485 = vmatprep.subr.mxu0 0.0
    %486 = vmatpush1.msra.mxu0 %v315
    %487 = vmatprep.subr.mxu0 0.0
    %488 = vmatpush1.msra.mxu0 %v314
    %489 = vmatprep.subr.mxu0 0.0
    %490 = vmatpush2.msra.mxu0 0.0
    %491 = vmatprep.subr.mxu0 0.0
    %492 = vmatpush2.msra.mxu0 0.0
    %493 = vmatprep.subr.mxu0 0.0
    %494 = vmatpush2.msra.mxu0 0.0
    %495 = vmatprep.subr.mxu0 0.0
    %496 = vmatpush2.msra.mxu0 0.0
    %497 = vmatprep.subr.mxu0 0.0
    %498 = vmatpush2.msra.mxu0 0.0
    %499 = vmatprep.subr.mxu0 0.0
    %500 = vmatpush2.msra.mxu0 0.0
    %501 = vmatprep.subr.mxu0 0.0
    %502 = vmatpush2.msra.mxu0 0.0
    %503 = vmatprep.subr.mxu0 0.0
    %504 = vmatpush2.msra.mxu0 0.0
    %505 = vmatprep.subr.mxu0 0.0
    %506 = vmatpush2.msra.mxu0 0.0
    %507 = vmatprep.subr.mxu0 0.0
    %508 = vmatpush2.msra.mxu0 0.0
    %509 = vmatprep.subr.mxu0 0.0
    %510 = vmatpush2.msra.mxu0 0.0
    %511 = vmatprep.subr.mxu0 0.0
    %512 = vmatpush2.msra.mxu0 0.0
    %513 = vmatprep.subr.mxu0 0.0
    %514 = vmatpush2.msra.mxu0 0.0
    %515 = vmatprep.subr.mxu0 0.0
    %516 = vmatpush2.msra.mxu0 0.0
    %517 = vmatprep.subr.mxu0 0.0
    %518 = vmatpush2.msra.mxu0 0.0
    %519 = vmatprep.subr.mxu0 0.0
    %520 = vmatpush2.msra.mxu0 0.0
    %521 = vmatprep.mubr.f32.mxu0 0.0
    %522 = vmatmul.mubr.f32.gmra.mxu0 %v455
    %v523 = vpop.f32.mrf.mxu0
    %v524 = vadd.f32 0.0, %v523
    %v525 = vpop.f32.mrf.mxu0
    %526 = vmatprep.mubr.f32.mxu0 0.0
    %527 = vmatmul.mubr.f32.gmra.mxu0 %v456
    %v528 = vpop.f32.mrf.mxu0
    %v529 = vadd.f32 0.0, %v528
    %v530 = vpop.f32.mrf.mxu0
    %531 = vdwg.mxu0
    %vm532 = vcmp.ge.s32.totalorder %v371, 1
    %vm533 = vcmp.ge.s32.totalorder %v372, 1
    %v534 = vsel %vm532, %v524, -1e+30
    %v535 = vsel %vm533, %v529, -1e+30
    %v536 = vrot.slane %v306, 7
    %v537 = vrot.slane %v311, 7
    %v538 = vsel %vm452, %v536, %v537
    %v539 = vsel %vm452, %v537, %v536
    %v540 = vrot.slane %v231, 6
    %v541 = vrot.slane %v237, 6
    %vm542 = vcmp.lt.s32.totalorder %v347, 2
    %v543 = vsel %vm542, %v540, %v541
    %v544 = vsel %vm542, %v541, %v540
    %v545 = vmul.f32 %v229, %v544
    %v546 = vmul.f32 %v235, %v543
    %547 = vmatprep.subr.mxu0 0.0
    %548 = vmatpush1.msra.mxu0 %v329
    %549 = vmatprep.subr.mxu0 0.0
    %550 = vmatpush1.msra.mxu0 %v328
    %551 = vmatprep.subr.mxu0 0.0
    %552 = vmatpush1.msra.mxu0 %v327
    %553 = vmatprep.subr.mxu0 0.0
    %554 = vmatpush1.msra.mxu0 %v326
    %555 = vmatprep.subr.mxu0 0.0
    %556 = vmatpush1.msra.mxu0 %v325
    %557 = vmatprep.subr.mxu0 0.0
    %558 = vmatpush1.msra.mxu0 %v324
    %559 = vmatprep.subr.mxu0 0.0
    %560 = vmatpush1.msra.mxu0 %v323
    %561 = vmatprep.subr.mxu0 0.0
    %562 = vmatpush1.msra.mxu0 %v322
    %563 = vmatprep.subr.mxu0 0.0
    %564 = vmatpush1.msra.mxu0 %v321
    %565 = vmatprep.subr.mxu0 0.0
    %566 = vmatpush1.msra.mxu0 %v320
    %567 = vmatprep.subr.mxu0 0.0
    %568 = vmatpush1.msra.mxu0 %v319
    %569 = vmatprep.subr.mxu0 0.0
    %570 = vmatpush1.msra.mxu0 %v318
    %571 = vmatprep.subr.mxu0 0.0
    %572 = vmatpush1.msra.mxu0 %v317
    %573 = vmatprep.subr.mxu0 0.0
    %574 = vmatpush1.msra.mxu0 %v316
    %575 = vmatprep.subr.mxu0 0.0
    %576 = vmatpush1.msra.mxu0 %v315
    %577 = vmatprep.subr.mxu0 0.0
    %578 = vmatpush1.msra.mxu0 %v314
    %579 = vmatprep.subr.mxu0 0.0
    %580 = vmatpush2.msra.mxu0 0.0
    %581 = vmatprep.subr.mxu0 0.0
    %582 = vmatpush2.msra.mxu0 0.0
    %583 = vmatprep.subr.mxu0 0.0
    %584 = vmatpush2.msra.mxu0 0.0
    %585 = vmatprep.subr.mxu0 0.0
    %586 = vmatpush2.msra.mxu0 0.0
    %587 = vmatprep.subr.mxu0 0.0
    %588 = vmatpush2.msra.mxu0 0.0
    %589 = vmatprep.subr.mxu0 0.0
    %590 = vmatpush2.msra.mxu0 0.0
    %591 = vmatprep.subr.mxu0 0.0
    %592 = vmatpush2.msra.mxu0 0.0
    %593 = vmatprep.subr.mxu0 0.0
    %594 = vmatpush2.msra.mxu0 0.0
    %595 = vmatprep.subr.mxu0 0.0
    %596 = vmatpush2.msra.mxu0 0.0
    %597 = vmatprep.subr.mxu0 0.0
    %598 = vmatpush2.msra.mxu0 0.0
    %599 = vmatprep.subr.mxu0 0.0
    %600 = vmatpush2.msra.mxu0 0.0
    %601 = vmatprep.subr.mxu0 0.0
    %602 = vmatpush2.msra.mxu0 0.0
    %603 = vmatprep.subr.mxu0 0.0
    %604 = vmatpush2.msra.mxu0 0.0
    %605 = vmatprep.subr.mxu0 0.0
    %606 = vmatpush2.msra.mxu0 0.0
    %607 = vmatprep.subr.mxu0 0.0
    %608 = vmatpush2.msra.mxu0 0.0
    %609 = vmatprep.subr.mxu0 0.0
    %610 = vmatpush2.msra.mxu0 0.0
    %611 = vmatprep.mubr.f32.mxu0 0.0
    %612 = vmatmul.mubr.f32.gmra.mxu0 %v545
    %v613 = vpop.f32.mrf.mxu0
    %v614 = vadd.f32 0.0, %v613
    %v615 = vpop.f32.mrf.mxu0
    %616 = vmatprep.mubr.f32.mxu0 0.0
    %617 = vmatmul.mubr.f32.gmra.mxu0 %v546
    %v618 = vpop.f32.mrf.mxu0
    %v619 = vadd.f32 0.0, %v618
    %v620 = vpop.f32.mrf.mxu0
    %621 = vdwg.mxu0
    %vm622 = vcmp.ge.s32.totalorder %v371, 2
    %vm623 = vcmp.ge.s32.totalorder %v372, 2
    %v624 = vsel %vm622, %v614, -1e+30
    %v625 = vsel %vm623, %v619, -1e+30
    %v626 = vrot.slane %v306, 6
    %v627 = vrot.slane %v311, 6
    %v628 = vsel %vm542, %v626, %v627
    %v629 = vsel %vm542, %v627, %v626
    %v630 = vmax.f32 %v442, %v534
    %v631 = vmax.f32 %v447, %v535
    %v632 = vmax.f32 %v630, %v624
    %v633 = vmax.f32 %v631, %v625
    %v634 = vsub.f32 %v442, %v632
    %v635 = vsub.f32 %v447, %v633
    %v636 = vmul.f32 %v634, 1.442695
    %v637 = vpow.pop %v636
    %v638 = vmul.f32 %v635, 1.442695
    %v639 = vpow.pop %v638
    %v640 = vsub.f32 %v534, %v632
    %v641 = vsub.f32 %v535, %v633
    %v642 = vmul.f32 %v640, 1.442695
    %v643 = vpow.pop %v642
    %v644 = vmul.f32 %v641, 1.442695
    %v645 = vpow.pop %v644
    %v646 = vsub.f32 %v624, %v632
    %v647 = vsub.f32 %v625, %v633
    %v648 = vmul.f32 %v646, 1.442695
    %v649 = vpow.pop %v648
    %v650 = vmul.f32 %v647, 1.442695
    %v651 = vpow.pop %v650
    %v652 = vadd.f32 %v637, %v643
    %v653 = vadd.f32 %v639, %v645
    %v654 = vadd.f32 %v652, %v649
    %v655 = vadd.f32 %v653, %v651
    %v656 = vrcp.pop %v654
    %v657 = vrcp.pop %v655
    %v658 = vmul.f32 %v637, %v656
    %v659 = vmul.f32 %v639, %v657
    %660 = vmatprep.subr.mxu0 0.0
    %661 = vmatpush1.msra.mxu0 %v345
    %662 = vmatprep.subr.mxu0 0.0
    %663 = vmatpush1.msra.mxu0 %v344
    %664 = vmatprep.subr.mxu0 0.0
    %665 = vmatpush1.msra.mxu0 %v343
    %666 = vmatprep.subr.mxu0 0.0
    %667 = vmatpush1.msra.mxu0 %v342
    %668 = vmatprep.subr.mxu0 0.0
    %669 = vmatpush1.msra.mxu0 %v341
    %670 = vmatprep.subr.mxu0 0.0
    %671 = vmatpush1.msra.mxu0 %v340
    %672 = vmatprep.subr.mxu0 0.0
    %673 = vmatpush1.msra.mxu0 %v339
    %674 = vmatprep.subr.mxu0 0.0
    %675 = vmatpush1.msra.mxu0 %v338
    %676 = vmatprep.subr.mxu0 0.0
    %677 = vmatpush1.msra.mxu0 %v337
    %678 = vmatprep.subr.mxu0 0.0
    %679 = vmatpush1.msra.mxu0 %v336
    %680 = vmatprep.subr.mxu0 0.0
    %681 = vmatpush1.msra.mxu0 %v335
    %682 = vmatprep.subr.mxu0 0.0
    %683 = vmatpush1.msra.mxu0 %v334
    %684 = vmatprep.subr.mxu0 0.0
    %685 = vmatpush1.msra.mxu0 %v333
    %686 = vmatprep.subr.mxu0 0.0
    %687 = vmatpush1.msra.mxu0 %v332
    %688 = vmatprep.subr.mxu0 0.0
    %689 = vmatpush1.msra.mxu0 %v331
    %690 = vmatprep.subr.mxu0 0.0
    %691 = vmatpush1.msra.mxu0 %v330
    %692 = vmatprep.subr.mxu0 0.0
    %693 = vmatpush2.msra.mxu0 0.0
    %694 = vmatprep.subr.mxu0 0.0
    %695 = vmatpush2.msra.mxu0 0.0
    %696 = vmatprep.subr.mxu0 0.0
    %697 = vmatpush2.msra.mxu0 0.0
    %698 = vmatprep.subr.mxu0 0.0
    %699 = vmatpush2.msra.mxu0 0.0
    %700 = vmatprep.subr.mxu0 0.0
    %701 = vmatpush2.msra.mxu0 0.0
    %702 = vmatprep.subr.mxu0 0.0
    %703 = vmatpush2.msra.mxu0 0.0
    %704 = vmatprep.subr.mxu0 0.0
    %705 = vmatpush2.msra.mxu0 0.0
    %706 = vmatprep.subr.mxu0 0.0
    %707 = vmatpush2.msra.mxu0 0.0
    %708 = vmatprep.subr.mxu0 0.0
    %709 = vmatpush2.msra.mxu0 0.0
    %710 = vmatprep.subr.mxu0 0.0
    %711 = vmatpush2.msra.mxu0 0.0
    %712 = vmatprep.subr.mxu0 0.0
    %713 = vmatpush2.msra.mxu0 0.0
    %714 = vmatprep.subr.mxu0 0.0
    %715 = vmatpush2.msra.mxu0 0.0
    %716 = vmatprep.subr.mxu0 0.0
    %717 = vmatpush2.msra.mxu0 0.0
    %718 = vmatprep.subr.mxu0 0.0
    %719 = vmatpush2.msra.mxu0 0.0
    %720 = vmatprep.subr.mxu0 0.0
    %721 = vmatpush2.msra.mxu0 0.0
    %722 = vmatprep.subr.mxu0 0.0
    %723 = vmatpush2.msra.mxu0 0.0
    %724 = vmatprep.mubr.f32.mxu0 0.0
    %725 = vmatmul.mubr.f32.gmra.mxu0 %v658
    %v726 = vpop.f32.mrf.mxu0
    %v727 = vadd.f32 0.0, %v726
    %v728 = vpop.f32.mrf.mxu0
    %729 = vmatprep.mubr.f32.mxu0 0.0
    %730 = vmatmul.mubr.f32.gmra.mxu0 %v659
    %v731 = vpop.f32.mrf.mxu0
    %v732 = vadd.f32 0.0, %v731
    %v733 = vpop.f32.mrf.mxu0
    %734 = vdwg.mxu0
    %v735 = vmul.f32 %v727, %v306
    %v736 = vmul.f32 %v732, %v311
    %v737 = vadd.f32 %v735, 0.0
    %v738 = vadd.f32 %v736, 0.0
    %v739 = vmul.f32 %v643, %v656
    %v740 = vmul.f32 %v645, %v657
    %741 = vmatprep.subr.mxu0 0.0
    %742 = vmatpush1.msra.mxu0 %v345
    %743 = vmatprep.subr.mxu0 0.0
    %744 = vmatpush1.msra.mxu0 %v344
    %745 = vmatprep.subr.mxu0 0.0
    %746 = vmatpush1.msra.mxu0 %v343
    %747 = vmatprep.subr.mxu0 0.0
    %748 = vmatpush1.msra.mxu0 %v342
    %749 = vmatprep.subr.mxu0 0.0
    %750 = vmatpush1.msra.mxu0 %v341
    %751 = vmatprep.subr.mxu0 0.0
    %752 = vmatpush1.msra.mxu0 %v340
    %753 = vmatprep.subr.mxu0 0.0
    %754 = vmatpush1.msra.mxu0 %v339
    %755 = vmatprep.subr.mxu0 0.0
    %756 = vmatpush1.msra.mxu0 %v338
    %757 = vmatprep.subr.mxu0 0.0
    %758 = vmatpush1.msra.mxu0 %v337
    %759 = vmatprep.subr.mxu0 0.0
    %760 = vmatpush1.msra.mxu0 %v336
    %761 = vmatprep.subr.mxu0 0.0
    %762 = vmatpush1.msra.mxu0 %v335
    %763 = vmatprep.subr.mxu0 0.0
    %764 = vmatpush1.msra.mxu0 %v334
    %765 = vmatprep.subr.mxu0 0.0
    %766 = vmatpush1.msra.mxu0 %v333
    %767 = vmatprep.subr.mxu0 0.0
    %768 = vmatpush1.msra.mxu0 %v332
    %769 = vmatprep.subr.mxu0 0.0
    %770 = vmatpush1.msra.mxu0 %v331
    %771 = vmatprep.subr.mxu0 0.0
    %772 = vmatpush1.msra.mxu0 %v330
    %773 = vmatprep.subr.mxu0 0.0
    %774 = vmatpush2.msra.mxu0 0.0
    %775 = vmatprep.subr.mxu0 0.0
    %776 = vmatpush2.msra.mxu0 0.0
    %777 = vmatprep.subr.mxu0 0.0
    %778 = vmatpush2.msra.mxu0 0.0
    %779 = vmatprep.subr.mxu0 0.0
    %780 = vmatpush2.msra.mxu0 0.0
    %781 = vmatprep.subr.mxu0 0.0
    %782 = vmatpush2.msra.mxu0 0.0
    %783 = vmatprep.subr.mxu0 0.0
    %784 = vmatpush2.msra.mxu0 0.0
    %785 = vmatprep.subr.mxu0 0.0
    %786 = vmatpush2.msra.mxu0 0.0
    %787 = vmatprep.subr.mxu0 0.0
    %788 = vmatpush2.msra.mxu0 0.0
    %789 = vmatprep.subr.mxu0 0.0
    %790 = vmatpush2.msra.mxu0 0.0
    %791 = vmatprep.subr.mxu0 0.0
    %792 = vmatpush2.msra.mxu0 0.0
    %793 = vmatprep.subr.mxu0 0.0
    %794 = vmatpush2.msra.mxu0 0.0
    %795 = vmatprep.subr.mxu0 0.0
    %796 = vmatpush2.msra.mxu0 0.0
    %797 = vmatprep.subr.mxu0 0.0
    %798 = vmatpush2.msra.mxu0 0.0
    %799 = vmatprep.subr.mxu0 0.0
    %800 = vmatpush2.msra.mxu0 0.0
    %801 = vmatprep.subr.mxu0 0.0
    %802 = vmatpush2.msra.mxu0 0.0
    %803 = vmatprep.subr.mxu0 0.0
    %804 = vmatpush2.msra.mxu0 0.0
    %805 = vmatprep.mubr.f32.mxu0 0.0
    %806 = vmatmul.mubr.f32.gmra.mxu0 %v739
    %v807 = vpop.f32.mrf.mxu0
    %v808 = vadd.f32 0.0, %v807
    %v809 = vpop.f32.mrf.mxu0
    %810 = vmatprep.mubr.f32.mxu0 0.0
    %811 = vmatmul.mubr.f32.gmra.mxu0 %v740
    %v812 = vpop.f32.mrf.mxu0
    %v813 = vadd.f32 0.0, %v812
    %v814 = vpop.f32.mrf.mxu0
    %815 = vdwg.mxu0
    %v816 = vmul.f32 %v808, %v539
    %v817 = vmul.f32 %v813, %v538
    %v818 = vadd.f32 %v737, %v816
    %v819 = vadd.f32 %v738, %v817
    %v820 = vmul.f32 %v649, %v656
    %v821 = vmul.f32 %v651, %v657
    %822 = vmatprep.subr.mxu0 0.0
    %823 = vmatpush1.msra.mxu0 %v345
    %824 = vmatprep.subr.mxu0 0.0
    %825 = vmatpush1.msra.mxu0 %v344
    %826 = vmatprep.subr.mxu0 0.0
    %827 = vmatpush1.msra.mxu0 %v343
    %828 = vmatprep.subr.mxu0 0.0
    %829 = vmatpush1.msra.mxu0 %v342
    %830 = vmatprep.subr.mxu0 0.0
    %831 = vmatpush1.msra.mxu0 %v341
    %832 = vmatprep.subr.mxu0 0.0
    %833 = vmatpush1.msra.mxu0 %v340
    %834 = vmatprep.subr.mxu0 0.0
    %835 = vmatpush1.msra.mxu0 %v339
    %836 = vmatprep.subr.mxu0 0.0
    %837 = vmatpush1.msra.mxu0 %v338
    %838 = vmatprep.subr.mxu0 0.0
    %839 = vmatpush1.msra.mxu0 %v337
    %840 = vmatprep.subr.mxu0 0.0
    %841 = vmatpush1.msra.mxu0 %v336
    %842 = vmatprep.subr.mxu0 0.0
    %843 = vmatpush1.msra.mxu0 %v335
    %844 = vmatprep.subr.mxu0 0.0
    %845 = vmatpush1.msra.mxu0 %v334
    %846 = vmatprep.subr.mxu0 0.0
    %847 = vmatpush1.msra.mxu0 %v333
    %848 = vmatprep.subr.mxu0 0.0
    %849 = vmatpush1.msra.mxu0 %v332
    %850 = vmatprep.subr.mxu0 0.0
    %851 = vmatpush1.msra.mxu0 %v331
    %852 = vmatprep.subr.mxu0 0.0
    %853 = vmatpush1.msra.mxu0 %v330
    %854 = vmatprep.subr.mxu0 0.0
    %855 = vmatpush2.msra.mxu0 0.0
    %856 = vmatprep.subr.mxu0 0.0
    %857 = vmatpush2.msra.mxu0 0.0
    %858 = vmatprep.subr.mxu0 0.0
    %859 = vmatpush2.msra.mxu0 0.0
    %860 = vmatprep.subr.mxu0 0.0
    %861 = vmatpush2.msra.mxu0 0.0
    %862 = vmatprep.subr.mxu0 0.0
    %863 = vmatpush2.msra.mxu0 0.0
    %864 = vmatprep.subr.mxu0 0.0
    %865 = vmatpush2.msra.mxu0 0.0
    %866 = vmatprep.subr.mxu0 0.0
    %867 = vmatpush2.msra.mxu0 0.0
    %868 = vmatprep.subr.mxu0 0.0
    %869 = vmatpush2.msra.mxu0 0.0
    %870 = vmatprep.subr.mxu0 0.0
    %871 = vmatpush2.msra.mxu0 0.0
    %872 = vmatprep.subr.mxu0 0.0
    %873 = vmatpush2.msra.mxu0 0.0
    %874 = vmatprep.subr.mxu0 0.0
    %875 = vmatpush2.msra.mxu0 0.0
    %876 = vmatprep.subr.mxu0 0.0
    %877 = vmatpush2.msra.mxu0 0.0
    %878 = vmatprep.subr.mxu0 0.0
    %879 = vmatpush2.msra.mxu0 0.0
    %880 = vmatprep.subr.mxu0 0.0
    %881 = vmatpush2.msra.mxu0 0.0
    %882 = vmatprep.subr.mxu0 0.0
    %883 = vmatpush2.msra.mxu0 0.0
    %884 = vmatprep.subr.mxu0 0.0
    %885 = vmatpush2.msra.mxu0 0.0
    %886 = vmatprep.mubr.f32.mxu0 0.0
    %887 = vmatmul.mubr.f32.gmra.mxu0 %v820
    %v888 = vpop.f32.mrf.mxu0
    %v889 = vadd.f32 0.0, %v888
    %v890 = vpop.f32.mrf.mxu0
    %891 = vmatprep.mubr.f32.mxu0 0.0
    %892 = vmatmul.mubr.f32.gmra.mxu0 %v821
    %v893 = vpop.f32.mrf.mxu0
    %v894 = vadd.f32 0.0, %v893
    %v895 = vpop.f32.mrf.mxu0
    %896 = vdwg.mxu0
    %v897 = vmul.f32 %v889, %v629
    %v898 = vmul.f32 %v894, %v628
    %v899 = vadd.f32 %v818, %v897
    %v900 = vadd.f32 %v819, %v898
    %v901 = vld [vmem:[#allocation7] sm:$0xff]
    %v902 = vld [vmem:[#allocation7 + $0x8] sm:$0xff]
    %v903 = vld [vmem:[#allocation7 + $0x10] sm:$0xff]
    %v904 = vld [vmem:[#allocation7 + $0x18] sm:$0xff]
    %v905 = vld [vmem:[#allocation7 + $0x20] sm:$0xff]
    %v906 = vld [vmem:[#allocation7 + $0x28] sm:$0xff]
    %v907 = vld [vmem:[#allocation7 + $0x30] sm:$0xff]
    %v908 = vld [vmem:[#allocation7 + $0x38] sm:$0xff]
    %v909 = vld [vmem:[#allocation7 + $0x40] sm:$0xff]
    %v910 = vld [vmem:[#allocation7 + $0x48] sm:$0xff]
    %v911 = vld [vmem:[#allocation7 + $0x50] sm:$0xff]
    %v912 = vld [vmem:[#allocation7 + $0x58] sm:$0xff]
    %v913 = vld [vmem:[#allocation7 + $0x60] sm:$0xff]
    %v914 = vld [vmem:[#allocation7 + $0x68] sm:$0xff]
    %v915 = vld [vmem:[#allocation7 + $0x70] sm:$0xff]
    %v916 = vld [vmem:[#allocation7 + $0x78] sm:$0xff]
    %v917 = vld [vmem:[%s4] sm:$0x1]
    %v919 = vlaneseq
    %v920 = vshrl.u32 %v919, 7
    %v921 = vsub.s32 0, %v920
    %v922 = vrot.slane %v917, %v921
    %924 = vmatprep.subr.mxu0 0.0
    %925 = vmatpush1.msra.mxu0 %v916
    %926 = vmatprep.subr.mxu0 0.0
    %927 = vmatpush1.msra.mxu0 %v915
    %928 = vmatprep.subr.mxu0 0.0
    %929 = vmatpush1.msra.mxu0 %v914
    %930 = vmatprep.subr.mxu0 0.0
    %931 = vmatpush1.msra.mxu0 %v913
    %932 = vmatprep.subr.mxu0 0.0
    %933 = vmatpush1.msra.mxu0 %v912
    %934 = vmatprep.subr.mxu0 0.0
    %935 = vmatpush1.msra.mxu0 %v911
    %936 = vmatprep.subr.mxu0 0.0
    %937 = vmatpush1.msra.mxu0 %v910
    %938 = vmatprep.subr.mxu0 0.0
    %939 = vmatpush1.msra.mxu0 %v909
    %940 = vmatprep.subr.mxu0 0.0
    %941 = vmatpush1.msra.mxu0 %v908
    %942 = vmatprep.subr.mxu0 0.0
    %943 = vmatpush1.msra.mxu0 %v907
    %944 = vmatprep.subr.mxu0 0.0
    %945 = vmatpush1.msra.mxu0 %v906
    %946 = vmatprep.subr.mxu0 0.0
    %947 = vmatpush1.msra.mxu0 %v905
    %948 = vmatprep.subr.mxu0 0.0
    %949 = vmatpush1.msra.mxu0 %v904
    %950 = vmatprep.subr.mxu0 0.0
    %951 = vmatpush1.msra.mxu0 %v903
    %952 = vmatprep.subr.mxu0 0.0
    %953 = vmatpush1.msra.mxu0 %v902
    %954 = vmatprep.subr.mxu0 0.0
    %955 = vmatpush1.msra.mxu0 %v901
    %956 = vmatprep.subr.mxu0 0.0
    %957 = vmatpush2.msra.mxu0 0.0
    %958 = vmatprep.subr.mxu0 0.0
    %959 = vmatpush2.msra.mxu0 0.0
    %960 = vmatprep.subr.mxu0 0.0
    %961 = vmatpush2.msra.mxu0 0.0
    %962 = vmatprep.subr.mxu0 0.0
    %963 = vmatpush2.msra.mxu0 0.0
    %964 = vmatprep.subr.mxu0 0.0
    %965 = vmatpush2.msra.mxu0 0.0
    %966 = vmatprep.subr.mxu0 0.0
    %967 = vmatpush2.msra.mxu0 0.0
    %968 = vmatprep.subr.mxu0 0.0
    %969 = vmatpush2.msra.mxu0 0.0
    %970 = vmatprep.subr.mxu0 0.0
    %971 = vmatpush2.msra.mxu0 0.0
    %972 = vmatprep.subr.mxu0 0.0
    %973 = vmatpush2.msra.mxu0 0.0
    %974 = vmatprep.subr.mxu0 0.0
    %975 = vmatpush2.msra.mxu0 0.0
    %976 = vmatprep.subr.mxu0 0.0
    %977 = vmatpush2.msra.mxu0 0.0
    %978 = vmatprep.subr.mxu0 0.0
    %979 = vmatpush2.msra.mxu0 0.0
    %980 = vmatprep.subr.mxu0 0.0
    %981 = vmatpush2.msra.mxu0 0.0
    %982 = vmatprep.subr.mxu0 0.0
    %983 = vmatpush2.msra.mxu0 0.0
    %984 = vmatprep.subr.mxu0 0.0
    %985 = vmatpush2.msra.mxu0 0.0
    %986 = vmatprep.subr.mxu0 0.0
    %987 = vmatpush2.msra.mxu0 0.0
    %988 = vmatprep.mubr.f32.mxu0 0.0
    %989 = vmatmul.mubr.f32.gmra.mxu0 %v899
    %v990 = vpop.f32.mrf.mxu0
    %v991 = vadd.f32 %v922, %v990
    %v992 = vpop.f32.mrf.mxu0
    %993 = vmatprep.mubr.f32.mxu0 0.0
    %994 = vmatmul.mubr.f32.gmra.mxu0 %v900
    %v995 = vpop.f32.mrf.mxu0
    %v996 = vadd.f32 %v922, %v995
    %v997 = vpop.f32.mrf.mxu0
    %998 = vdwg.mxu0
    %999 = vst [vmem:[#allocation11] sm:$0xff] %v991
    %1000 = vst [vmem:[#allocation11 + $0x8] sm:$0xff] %v996
    // Predicated region
    $region50: #{tpu_custom_call.1} parent=1 // pred_check
      _
    $region51: #{tpu_custom_call.1} parent=1 // pred_check_branch
      %1002 = sbr.rel (0) target = $region53
    $region52: #{tpu_custom_call.1} parent=1 // pred_region
      %s1004 = ssub.s32 256, 256
      %1005 = vsyncadd [#allocation4], %s1004
      %s1006 = sshll.u32 [#allocation11], 4
      %s1007 = int_to_ptr.vmem [resolvable:$true] %s1006
      %1012 = dma.vmem_to_hbm [thread:$0]  %s1007, 256, %s7, [#allocation4], 128, 128, 8
    $region53: #{tpu_custom_call.1} parent=1 // pred_fallthru
      _
    // Predicated region
    $region54: #{tpu_custom_call.1} parent=1 // pred_check
      _
    $region55: #{tpu_custom_call.1} parent=1 // pred_check_branch
      %1014 = sbr.rel (0) target = $region57
    $region56: #{tpu_custom_call.1} parent=1 // pred_region
      %1015 = dma.done [#allocation4], 256
    $region57: #{tpu_custom_call.1} parent=1 // pred_fallthru
      _
    %1016 = vsyncpa [#allocation3], 1
    %1017 = vsyncpa [#allocation6], 1
    %1018 = vsyncpa [#allocation9], 1
    %1019 = vsyncpa [#allocation4], 1

</llo_original>
